<compile_context>
chip_gen: v6e
topology: v6e:2x2x1
jax: 0.10.0
libtpu: 0.0.40
codegen_flags: <defaults>
</compile_context>

<pallas_src>
import functools
import math

import jax
import jax.numpy as jnp
from jax.experimental import pallas as pl
from jax.experimental.pallas import tpu as pltpu

LN_EPS = 1e-5
LANE = 128
SUBLANE = 8
MIB = 1024 * 1024


def _round_up(n: int, m: int) -> int:
    return (n + m - 1) // m * m


def _vmem_capacity_bytes() -> int:
    """Per-core VMEM capacity; falls back to the v5e/v6e value (128 MiB)."""
    try:
        return int(pltpu.get_tpu_info().vmem_capacity_bytes)
    except Exception:   # older jax without get_tpu_info / attribute mismatch
        return 128 * MIB


def _fused_layers_kernel(x_ref, w_ref, b_ref, g_ref, beta_ref, o_ref, *,
                         num_layers: int, hidden: int, padded: int):
    """All layers of  x = LayerNorm(x + x @ W_l + b_l)  on one resident row tile.

    x_ref    : (tm, Hp)     input rows (x.dtype), zero-padded beyond `hidden`
    w_ref    : (L, Hp, Hp)  bf16 weights (pre-transposed so y = x @ W), zero-padded
    b_ref    : (L, 1, Hp)   f32 bias, zero-padded
    g_ref    : (L, 1, Hp)   f32 LayerNorm gamma, zero-padded
    beta_ref : (L, 1, Hp)   f32 LayerNorm beta, zero-padded
    o_ref    : (tm, Hp)     output rows (x.dtype)
    """
    inv_h = 1.0 / float(hidden)          # compile-time constant, no in-loop divide
    pad_cols = float(padded - hidden)    # compile-time constant
    y = x_ref[...].astype(jnp.float32)   # residual + LN math in f32 (v5e: no bf16 VPU)
    # num_layers is small and static -> unrolled for LLO scheduler visibility.
    for l in range(num_layers):
        # Residual linear: bf16 operands on the MXU, f32 accumulation.
        y = y + (jnp.dot(y.astype(jnp.bfloat16), w_ref[l],
                         preferred_element_type=jnp.float32) + b_ref[l])
        # Two-pass LayerNorm over the true `hidden` columns.  Padded columns of y are
        # exactly zero here (zero-padded x/W/b and gamma=beta=0 keep them zero), so
        #   sum(y)        == sum over true columns
        #   sum((y-mu)^2) == true sum + pad_cols * mu^2   (exact correction below)
        mu = jnp.sum(y, axis=-1, keepdims=True) * inv_h
        d = y - mu
        sq = jnp.sum(d * d, axis=-1, keepdims=True)
        if pad_cols:
            sq = sq - pad_cols * (mu * mu)
        var = sq * inv_h
        y = d * jax.lax.rsqrt(var + LN_EPS)
        y = y * g_ref[l] + beta_ref[l]   # padded cols: gamma=beta=0 -> stay zero
    o_ref[...] = y.astype(o_ref.dtype)


def _build_call(*, num_layers, hidden, padded, tm, rows_p, io_dtype,
                single_buffer_params, io_alias, vmem_limit):
    kernel = functools.partial(_fused_layers_kernel, num_layers=num_layers,
                               hidden=hidden, padded=padded)
    L, Hp = num_layers, padded

    def param_spec(shape):
        index_map = lambda i, _s=shape: (0,) * len(_s)
        if single_buffer_params:
            # Grid-invariant operand: double-buffering buys nothing; single-buffering
            # halves its VMEM footprint (the weight slab is the dominant term).
            return pl.BlockSpec(shape, index_map, pipeline_mode=pl.Buffered(1))
        return pl.BlockSpec(shape, index_map)

    return pl.pallas_call(
        kernel,
        out_shape=jax.ShapeDtypeStruct((rows_p, Hp), io_dtype),
        grid_spec=pltpu.PrefetchScalarGridSpec(
            num_scalar_prefetch=0,
            grid=(rows_p // tm,),
            in_specs=[
                pl.BlockSpec((tm, Hp), lambda i: (i, 0)),     # activation row tile
                param_spec((L, Hp, Hp)),                      # all weights, resident
                param_spec((L, 1, Hp)),                       # bias
                param_spec((L, 1, Hp)),                       # gamma
                param_spec((L, 1, Hp)),                       # beta
            ],
            out_specs=pl.BlockSpec((tm, Hp), lambda i: (i, 0)),
        ),
        compiler_params=pltpu.CompilerParams(
            # TODO(synk): on v7x, switch to pltpu.CORE_PARALLEL if xprof shows only
            # one TensorCore engaged with plain "parallel".
            dimension_semantics=("parallel",),
            vmem_limit_bytes=vmem_limit,
        ),
        input_output_aliases=io_alias,
    )


def transformer_blocks_forward(x, params, *, tm=None):
    """x: [batch, seq, hidden].

    params: (W, b, gamma, beta) stacked over layers:
      W (L, H, H) already transposed so y = x @ W; b/gamma/beta (L, 1, H).
    """
    w, b, gamma, beta = params
    B, S, H = x.shape
    L = w.shape[0]
    rows = B * S

    # Lane-dense feature axis: pad hidden to a multiple of 128 (full vregs, unmasked
    # stores, >=128-wide MXU operands).
    Hp = _round_up(H, LANE)

    # Kernel activation I/O stays in the caller's floating dtype (bf16 callers halve
    # activation DMA bytes); math is f32 inside the kernel.
    if x.dtype in (jnp.dtype(jnp.float32), jnp.dtype(jnp.bfloat16)):
        io_dtype = x.dtype
    else:
        io_dtype = jnp.dtype(jnp.float32)

    # ---- Generation-aware VMEM budget & row-tile selection -------------------------
    vmem_cap = _vmem_capacity_bytes()
    is_multicore_small_vmem = vmem_cap <= 96 * MIB        # v7x-class: 64 MiB/core, 2 TC
    if is_multicore_small_vmem:
        vmem_limit = min(max(vmem_cap - 8 * MIB, 32 * MIB), 56 * MIB)
        base_tm = 256
    else:                                                  # v5e / v6e: 128 MiB, 1 TC
        vmem_limit = 100 * MIB
        base_tm = 1024 if Hp <= 512 else 512

    if tm is None:
        tm = base_tm
    tm_eff = min(_round_up(tm, SUBLANE), _round_up(rows, SUBLANE))

    # Only multi-TensorCore chips benefit from forcing >=2 grid steps; on 1-TC chips
    # the split just halves MXU LHS depth and adds a grid step of pure overhead.
    if (is_multicore_small_vmem and rows >= 2 * SUBLANE
            and _round_up(rows, tm_eff) // tm_eff < 2):
        tm_eff = _round_up((rows + 1) // 2, SUBLANE)

    itemsize = jnp.dtype(io_dtype).itemsize
    weight_bytes = L * Hp * Hp * 2            # bf16 weights, single-buffered
    param_bytes = 3 * L * Hp * 4              # bias / gamma / beta, f32
    # TODO(synk): when weight_bytes > ~0.75*vmem_limit, stream one layer slab at a
    # time (emit_pipeline / manual double buffer) instead of keeping all resident.
    while tm_eff > SUBLANE and (weight_bytes + param_bytes
                                + 2 * 2 * tm_eff * Hp * itemsize) > vmem_limit:
        tm_eff = _round_up(tm_eff // 2, SUBLANE)
    rows_p = _round_up(rows, tm_eff)

    # ---- Operand prep (pad / cast / HBM copies elided when possible) ---------------
    pad_cols = Hp - H
    pad_rows = rows_p - rows
    x2 = x.reshape(rows, H)
    if pad_cols or pad_rows or x2.dtype != io_dtype:
        x_p = jnp.pad(x2.astype(io_dtype), ((0, pad_rows), (0, pad_cols)))
        io_alias = {0: 0}        # fresh temporary -> safe to donate to the output
    else:
        x_p = x2
        io_alias = {}            # never clobber the caller's buffer

    if pad_cols:
        w_p = jnp.pad(w, ((0, 0), (0, pad_cols), (0, pad_cols))).astype(jnp.bfloat16)
        b_p = jnp.pad(b, ((0, 0), (0, 0), (0, pad_cols))).astype(jnp.float32)
        g_p = jnp.pad(gamma, ((0, 0), (0, 0), (0, pad_cols))).astype(jnp.float32)
        beta_p = jnp.pad(beta, ((0, 0), (0, 0), (0, pad_cols))).astype(jnp.float32)
    else:
        w_p = w.astype(jnp.bfloat16)
        b_p = b.astype(jnp.float32)
        g_p = gamma.astype(jnp.float32)
        beta_p = beta.astype(jnp.float32)

    operands = (x_p, w_p, b_p, g_p, beta_p)
    build = functools.partial(
        _build_call, num_layers=L, hidden=H, padded=Hp, tm=tm_eff, rows_p=rows_p,
        io_dtype=io_dtype, io_alias=io_alias, vmem_limit=vmem_limit)
    try:
        out_p = build(single_buffer_params=True)(*operands)
    except Exception:
        # Fallback for jax versions without BlockSpec(pipeline_mode=pl.Buffered(1)).
        out_p = build(single_buffer_params=False)(*operands)

    out = out_p
    if pad_rows or pad_cols:
        out = out[:rows, :H]
    if out.dtype != x.dtype:
        out = out.astype(x.dtype)
    return out.reshape(B, S, H)


def init_params(key, num_layers, hidden_dim, dtype=jnp.float32):
    """Synthetic parameters with nn.Linear / nn.LayerNorm shapes, stacked over layers.

    TODO(synk): real nn.Linear stores weight as (out, in); apply a transpose when
    importing PyTorch checkpoints so the kernel's y = x @ W matches F.linear.
    """
    bound = 1.0 / math.sqrt(hidden_dim)
    kw, kb = jax.random.split(key)
    w = jax.random.uniform(kw, (num_layers, hidden_dim, hidden_dim), dtype,
                           minval=-bound, maxval=bound)
    b = jax.random.uniform(kb, (num_layers, 1, hidden_dim), dtype,
                           minval=-bound, maxval=bound)
    gamma = jnp.ones((num_layers, 1, hidden_dim), dtype)
    beta = jnp.zeros((num_layers, 1, hidden_dim), dtype)
    return w, b, gamma, beta


def _reference(x, params):
    """Pure-JAX reference mirroring the kernel's numerics (bf16 matmul operands, f32 LN)."""
    w, b, gamma, beta = params
    y = x.astype(jnp.float32)
    for l in range(w.shape[0]):
        h = jnp.einsum("bsh,hk->bsk",
                       y.astype(jnp.bfloat16), w[l].astype(jnp.bfloat16),
                       preferred_element_type=jnp.float32)
        y = y + h + b[l, 0].astype(jnp.float32)
        mu = jnp.mean(y, axis=-1, keepdims=True)
        var = jnp.mean((y - mu) ** 2, axis=-1, keepdims=True)
        y = (y - mu) * jax.lax.rsqrt(var + LN_EPS)
        y = y * gamma[l, 0] + beta[l, 0]
    return y.astype(x.dtype)


if __name__ == "__main__":
    batch, seq, hidden = 2, 8, 32   # rows = 16; hidden is lane-padded to 128 internally
    num_layers = 3

    key = jax.random.PRNGKey(0)
    kx, kp = jax.random.split(key)
    x = jax.random.normal(kx, (batch, seq, hidden), jnp.float32)
    params = init_params(kp, num_layers, hidden)

    out = transformer_blocks_forward(x, params)
    out = jax.block_until_ready(out)

    ref = _reference(x, params)
    assert out.shape == (batch, seq, hidden)
    # bf16 matmul operands -> ~0.4% quantization per layer; 0.5% tolerance is tight.
    assert jnp.allclose(out, ref, atol=5e-3, rtol=5e-3), "mismatch vs reference"

    print("KERNEL_OK")
</pallas_src>

<mosaic_0001>
module attributes {stable_mosaic.version = 11 : i64} {
  func.func @_fused_layers_kernel(%arg0: i32, %arg1: memref<16x128xf32, #tpu.memory_space<vmem>>, %arg2: memref<3x128x128xbf16, #tpu.memory_space<vmem>>, %arg3: memref<3x1x128xf32, #tpu.memory_space<vmem>>, %arg4: memref<3x1x128xf32, #tpu.memory_space<vmem>>, %arg5: memref<3x1x128xf32, #tpu.memory_space<vmem>>, %arg6: memref<16x128xf32, #tpu.memory_space<vmem>>) attributes {dimension_semantics = [#tpu.dimension_semantics<parallel>], iteration_bounds = array<i64: 1>, scalar_prefetch = 0 : i64, scratch_operands = 0 : i64, tpu.core_type = #tpu.core_type<tc>, window_params = [{transform_indices = @transform_0, window_bounds = array<i64: 16, 128>}, {pipeline_mode = #tpu.pipeline_mode<synchronous>, transform_indices = @transform_1, window_bounds = array<i64: 3, 128, 128>}, {pipeline_mode = #tpu.pipeline_mode<synchronous>, transform_indices = @transform_2, window_bounds = array<i64: 3, 1, 128>}, {pipeline_mode = #tpu.pipeline_mode<synchronous>, transform_indices = @transform_3, window_bounds = array<i64: 3, 1, 128>}, {pipeline_mode = #tpu.pipeline_mode<synchronous>, transform_indices = @transform_4, window_bounds = array<i64: 3, 1, 128>}, {transform_indices = @transform_5, window_bounds = array<i64: 16, 128>}]} {
    %c0 = arith.constant 0 : index
    %c0_0 = arith.constant 0 : index
    %0 = vector.load %arg1[%c0, %c0_0] : memref<16x128xf32, #tpu.memory_space<vmem>>, vector<16x128xf32>
    %1 = arith.truncf %0 : vector<16x128xf32> to vector<16x128xbf16>
    %c0_1 = arith.constant 0 : index
    %c0_2 = arith.constant 0 : index
    %c0_3 = arith.constant 0 : index
    %2 = vector.load %arg2[%c0_1, %c0_2, %c0_3] : memref<3x128x128xbf16, #tpu.memory_space<vmem>>, vector<1x128x128xbf16>
    %3 = vector.shape_cast %2 : vector<1x128x128xbf16> to vector<128x128xbf16>
    %cst = arith.constant dense<0.000000e+00> : vector<16x128xf32>
    %4 = tpu.matmul %1, %3, %cst {dimension_numbers = #tpu.dot_dimension_numbers<[1], [0], [0], [1], [0, 0, 1, 1], [], []>} : vector<16x128xbf16>, vector<128x128xbf16>, vector<16x128xf32> -> vector<16x128xf32>
    %c0_4 = arith.constant 0 : index
    %c0_5 = arith.constant 0 : index
    %c0_6 = arith.constant 0 : index
    %5 = vector.load %arg3[%c0_4, %c0_5, %c0_6] : memref<3x1x128xf32, #tpu.memory_space<vmem>>, vector<1x1x128xf32>
    %6 = vector.shape_cast %5 : vector<1x1x128xf32> to vector<1x128xf32>
    %7 = vector.broadcast %6 : vector<1x128xf32> to vector<16x128xf32>
    %8 = arith.addf %4, %7 : vector<16x128xf32>
    %9 = arith.addf %0, %8 : vector<16x128xf32>
    %cst_7 = arith.constant dense<0.000000e+00> : vector<16xf32>
    %10 = vector.multi_reduction <add>, %9, %cst_7 [1] : vector<16x128xf32> to vector<16xf32>
    %11 = vector.shape_cast %10 : vector<16xf32> to vector<16x1xf32>
    %cst_8 = arith.constant 3.125000e-02 : f32
    %12 = vector.broadcast %cst_8 : f32 to vector<16x1xf32>
    %13 = arith.mulf %11, %12 : vector<16x1xf32>
    %14 = vector.broadcast %13 : vector<16x1xf32> to vector<16x128xf32>
    %15 = arith.subf %9, %14 : vector<16x128xf32>
    %16 = arith.mulf %15, %15 : vector<16x128xf32>
    %cst_9 = arith.constant dense<0.000000e+00> : vector<16xf32>
    %17 = vector.multi_reduction <add>, %16, %cst_9 [1] : vector<16x128xf32> to vector<16xf32>
    %18 = vector.shape_cast %17 : vector<16xf32> to vector<16x1xf32>
    %19 = arith.mulf %13, %13 : vector<16x1xf32>
    %cst_10 = arith.constant 9.600000e+01 : f32
    %20 = vector.broadcast %cst_10 : f32 to vector<16x1xf32>
    %21 = arith.mulf %20, %19 : vector<16x1xf32>
    %22 = arith.subf %18, %21 : vector<16x1xf32>
    %cst_11 = arith.constant 3.125000e-02 : f32
    %23 = vector.broadcast %cst_11 : f32 to vector<16x1xf32>
    %24 = arith.mulf %22, %23 : vector<16x1xf32>
    %cst_12 = arith.constant 9.99999974E-6 : f32
    %25 = vector.broadcast %cst_12 : f32 to vector<16x1xf32>
    %26 = arith.addf %24, %25 : vector<16x1xf32>
    %27 = math.rsqrt %26 : vector<16x1xf32>
    %28 = vector.broadcast %27 : vector<16x1xf32> to vector<16x128xf32>
    %29 = arith.mulf %15, %28 : vector<16x128xf32>
    %c0_13 = arith.constant 0 : index
    %c0_14 = arith.constant 0 : index
    %c0_15 = arith.constant 0 : index
    %30 = vector.load %arg4[%c0_13, %c0_14, %c0_15] : memref<3x1x128xf32, #tpu.memory_space<vmem>>, vector<1x1x128xf32>
    %31 = vector.shape_cast %30 : vector<1x1x128xf32> to vector<1x128xf32>
    %32 = vector.broadcast %31 : vector<1x128xf32> to vector<16x128xf32>
    %33 = arith.mulf %29, %32 : vector<16x128xf32>
    %c0_16 = arith.constant 0 : index
    %c0_17 = arith.constant 0 : index
    %c0_18 = arith.constant 0 : index
    %34 = vector.load %arg5[%c0_16, %c0_17, %c0_18] : memref<3x1x128xf32, #tpu.memory_space<vmem>>, vector<1x1x128xf32>
    %35 = vector.shape_cast %34 : vector<1x1x128xf32> to vector<1x128xf32>
    %36 = vector.broadcast %35 : vector<1x128xf32> to vector<16x128xf32>
    %37 = arith.addf %33, %36 : vector<16x128xf32>
    %38 = arith.truncf %37 : vector<16x128xf32> to vector<16x128xbf16>
    %c1 = arith.constant 1 : index
    %c0_19 = arith.constant 0 : index
    %c0_20 = arith.constant 0 : index
    %39 = vector.load %arg2[%c1, %c0_19, %c0_20] : memref<3x128x128xbf16, #tpu.memory_space<vmem>>, vector<1x128x128xbf16>
    %40 = vector.shape_cast %39 : vector<1x128x128xbf16> to vector<128x128xbf16>
    %cst_21 = arith.constant dense<0.000000e+00> : vector<16x128xf32>
    %41 = tpu.matmul %38, %40, %cst_21 {dimension_numbers = #tpu.dot_dimension_numbers<[1], [0], [0], [1], [0, 0, 1, 1], [], []>} : vector<16x128xbf16>, vector<128x128xbf16>, vector<16x128xf32> -> vector<16x128xf32>
    %c1_22 = arith.constant 1 : index
    %c0_23 = arith.constant 0 : index
    %c0_24 = arith.constant 0 : index
    %42 = vector.load %arg3[%c1_22, %c0_23, %c0_24] : memref<3x1x128xf32, #tpu.memory_space<vmem>>, vector<1x1x128xf32>
    %43 = vector.shape_cast %42 : vector<1x1x128xf32> to vector<1x128xf32>
    %44 = vector.broadcast %43 : vector<1x128xf32> to vector<16x128xf32>
    %45 = arith.addf %41, %44 : vector<16x128xf32>
    %46 = arith.addf %37, %45 : vector<16x128xf32>
    %cst_25 = arith.constant dense<0.000000e+00> : vector<16xf32>
    %47 = vector.multi_reduction <add>, %46, %cst_25 [1] : vector<16x128xf32> to vector<16xf32>
    %48 = vector.shape_cast %47 : vector<16xf32> to vector<16x1xf32>
    %cst_26 = arith.constant 3.125000e-02 : f32
    %49 = vector.broadcast %cst_26 : f32 to vector<16x1xf32>
    %50 = arith.mulf %48, %49 : vector<16x1xf32>
    %51 = vector.broadcast %50 : vector<16x1xf32> to vector<16x128xf32>
    %52 = arith.subf %46, %51 : vector<16x128xf32>
    %53 = arith.mulf %52, %52 : vector<16x128xf32>
    %cst_27 = arith.constant dense<0.000000e+00> : vector<16xf32>
    %54 = vector.multi_reduction <add>, %53, %cst_27 [1] : vector<16x128xf32> to vector<16xf32>
    %55 = vector.shape_cast %54 : vector<16xf32> to vector<16x1xf32>
    %56 = arith.mulf %50, %50 : vector<16x1xf32>
    %cst_28 = arith.constant 9.600000e+01 : f32
    %57 = vector.broadcast %cst_28 : f32 to vector<16x1xf32>
    %58 = arith.mulf %57, %56 : vector<16x1xf32>
    %59 = arith.subf %55, %58 : vector<16x1xf32>
    %cst_29 = arith.constant 3.125000e-02 : f32
    %60 = vector.broadcast %cst_29 : f32 to vector<16x1xf32>
    %61 = arith.mulf %59, %60 : vector<16x1xf32>
    %cst_30 = arith.constant 9.99999974E-6 : f32
    %62 = vector.broadcast %cst_30 : f32 to vector<16x1xf32>
    %63 = arith.addf %61, %62 : vector<16x1xf32>
    %64 = math.rsqrt %63 : vector<16x1xf32>
    %65 = vector.broadcast %64 : vector<16x1xf32> to vector<16x128xf32>
    %66 = arith.mulf %52, %65 : vector<16x128xf32>
    %c1_31 = arith.constant 1 : index
    %c0_32 = arith.constant 0 : index
    %c0_33 = arith.constant 0 : index
    %67 = vector.load %arg4[%c1_31, %c0_32, %c0_33] : memref<3x1x128xf32, #tpu.memory_space<vmem>>, vector<1x1x128xf32>
    %68 = vector.shape_cast %67 : vector<1x1x128xf32> to vector<1x128xf32>
    %69 = vector.broadcast %68 : vector<1x128xf32> to vector<16x128xf32>
    %70 = arith.mulf %66, %69 : vector<16x128xf32>
    %c1_34 = arith.constant 1 : index
    %c0_35 = arith.constant 0 : index
    %c0_36 = arith.constant 0 : index
    %71 = vector.load %arg5[%c1_34, %c0_35, %c0_36] : memref<3x1x128xf32, #tpu.memory_space<vmem>>, vector<1x1x128xf32>
    %72 = vector.shape_cast %71 : vector<1x1x128xf32> to vector<1x128xf32>
    %73 = vector.broadcast %72 : vector<1x128xf32> to vector<16x128xf32>
    %74 = arith.addf %70, %73 : vector<16x128xf32>
    %75 = arith.truncf %74 : vector<16x128xf32> to vector<16x128xbf16>
    %c2 = arith.constant 2 : index
    %c0_37 = arith.constant 0 : index
    %c0_38 = arith.constant 0 : index
    %76 = vector.load %arg2[%c2, %c0_37, %c0_38] : memref<3x128x128xbf16, #tpu.memory_space<vmem>>, vector<1x128x128xbf16>
    %77 = vector.shape_cast %76 : vector<1x128x128xbf16> to vector<128x128xbf16>
    %cst_39 = arith.constant dense<0.000000e+00> : vector<16x128xf32>
    %78 = tpu.matmul %75, %77, %cst_39 {dimension_numbers = #tpu.dot_dimension_numbers<[1], [0], [0], [1], [0, 0, 1, 1], [], []>} : vector<16x128xbf16>, vector<128x128xbf16>, vector<16x128xf32> -> vector<16x128xf32>
    %c2_40 = arith.constant 2 : index
    %c0_41 = arith.constant 0 : index
    %c0_42 = arith.constant 0 : index
    %79 = vector.load %arg3[%c2_40, %c0_41, %c0_42] : memref<3x1x128xf32, #tpu.memory_space<vmem>>, vector<1x1x128xf32>
    %80 = vector.shape_cast %79 : vector<1x1x128xf32> to vector<1x128xf32>
    %81 = vector.broadcast %80 : vector<1x128xf32> to vector<16x128xf32>
    %82 = arith.addf %78, %81 : vector<16x128xf32>
    %83 = arith.addf %74, %82 : vector<16x128xf32>
    %cst_43 = arith.constant dense<0.000000e+00> : vector<16xf32>
    %84 = vector.multi_reduction <add>, %83, %cst_43 [1] : vector<16x128xf32> to vector<16xf32>
    %85 = vector.shape_cast %84 : vector<16xf32> to vector<16x1xf32>
    %cst_44 = arith.constant 3.125000e-02 : f32
    %86 = vector.broadcast %cst_44 : f32 to vector<16x1xf32>
    %87 = arith.mulf %85, %86 : vector<16x1xf32>
    %88 = vector.broadcast %87 : vector<16x1xf32> to vector<16x128xf32>
    %89 = arith.subf %83, %88 : vector<16x128xf32>
    %90 = arith.mulf %89, %89 : vector<16x128xf32>
    %cst_45 = arith.constant dense<0.000000e+00> : vector<16xf32>
    %91 = vector.multi_reduction <add>, %90, %cst_45 [1] : vector<16x128xf32> to vector<16xf32>
    %92 = vector.shape_cast %91 : vector<16xf32> to vector<16x1xf32>
    %93 = arith.mulf %87, %87 : vector<16x1xf32>
    %cst_46 = arith.constant 9.600000e+01 : f32
    %94 = vector.broadcast %cst_46 : f32 to vector<16x1xf32>
    %95 = arith.mulf %94, %93 : vector<16x1xf32>
    %96 = arith.subf %92, %95 : vector<16x1xf32>
    %cst_47 = arith.constant 3.125000e-02 : f32
    %97 = vector.broadcast %cst_47 : f32 to vector<16x1xf32>
    %98 = arith.mulf %96, %97 : vector<16x1xf32>
    %cst_48 = arith.constant 9.99999974E-6 : f32
    %99 = vector.broadcast %cst_48 : f32 to vector<16x1xf32>
    %100 = arith.addf %98, %99 : vector<16x1xf32>
    %101 = math.rsqrt %100 : vector<16x1xf32>
    %102 = vector.broadcast %101 : vector<16x1xf32> to vector<16x128xf32>
    %103 = arith.mulf %89, %102 : vector<16x128xf32>
    %c2_49 = arith.constant 2 : index
    %c0_50 = arith.constant 0 : index
    %c0_51 = arith.constant 0 : index
    %104 = vector.load %arg4[%c2_49, %c0_50, %c0_51] : memref<3x1x128xf32, #tpu.memory_space<vmem>>, vector<1x1x128xf32>
    %105 = vector.shape_cast %104 : vector<1x1x128xf32> to vector<1x128xf32>
    %106 = vector.broadcast %105 : vector<1x128xf32> to vector<16x128xf32>
    %107 = arith.mulf %103, %106 : vector<16x128xf32>
    %c2_52 = arith.constant 2 : index
    %c0_53 = arith.constant 0 : index
    %c0_54 = arith.constant 0 : index
    %108 = vector.load %arg5[%c2_52, %c0_53, %c0_54] : memref<3x1x128xf32, #tpu.memory_space<vmem>>, vector<1x1x128xf32>
    %109 = vector.shape_cast %108 : vector<1x1x128xf32> to vector<1x128xf32>
    %110 = vector.broadcast %109 : vector<1x128xf32> to vector<16x128xf32>
    %111 = arith.addf %107, %110 : vector<16x128xf32>
    %c0_55 = arith.constant 0 : index
    %c0_56 = arith.constant 0 : index
    %112 = vector.load %arg6[%c0_55, %c0_56] : memref<16x128xf32, #tpu.memory_space<vmem>>, vector<16x128xf32>
    tpu.vector_store %arg6[%c0_55, %c0_56], %111 {strides = array<i32>} : memref<16x128xf32, #tpu.memory_space<vmem>>, vector<16x128xf32>,
    return
  }
  func.func @transform_0(%arg0: i32) -> (i32, i32) {
    %c0_i32 = arith.constant 0 : i32
    %c0_i32_0 = arith.constant 0 : i32
    return %arg0, %c0_i32 : i32, i32
  }
  func.func @transform_1(%arg0: i32) -> (i32, i32, i32) {
    %c0_i32 = arith.constant 0 : i32
    %c0_i32_0 = arith.constant 0 : i32
    %c0_i32_1 = arith.constant 0 : i32
    %c0_i32_2 = arith.constant 0 : i32
    return %c0_i32, %c0_i32_0, %c0_i32_1 : i32, i32, i32
  }
  func.func @transform_2(%arg0: i32) -> (i32, i32, i32) {
    %c0_i32 = arith.constant 0 : i32
    %c0_i32_0 = arith.constant 0 : i32
    %c0_i32_1 = arith.constant 0 : i32
    %c0_i32_2 = arith.constant 0 : i32
    return %c0_i32, %c0_i32_0, %c0_i32_1 : i32, i32, i32
  }
  func.func @transform_3(%arg0: i32) -> (i32, i32, i32) {
    %c0_i32 = arith.constant 0 : i32
    %c0_i32_0 = arith.constant 0 : i32
    %c0_i32_1 = arith.constant 0 : i32
    %c0_i32_2 = arith.constant 0 : i32
    return %c0_i32, %c0_i32_0, %c0_i32_1 : i32, i32, i32
  }
  func.func @transform_4(%arg0: i32) -> (i32, i32, i32) {
    %c0_i32 = arith.constant 0 : i32
    %c0_i32_0 = arith.constant 0 : i32
    %c0_i32_1 = arith.constant 0 : i32
    %c0_i32_2 = arith.constant 0 : i32
    return %c0_i32, %c0_i32_0, %c0_i32_1 : i32, i32, i32
  }
  func.func @transform_5(%arg0: i32) -> (i32, i32) {
    %c0_i32 = arith.constant 0 : i32
    %c0_i32_0 = arith.constant 0 : i32
    return %arg0, %c0_i32 : i32, i32
  }
}

module attributes {stable_mosaic.version = 11 : i64} {
  func.func @_fused_layers_kernel(%arg0: i32, %arg1: memref<16x128xf32, #tpu.memory_space<vmem>>, %arg2: memref<3x128x128xbf16, #tpu.memory_space<vmem>>, %arg3: memref<3x1x128xf32, #tpu.memory_space<vmem>>, %arg4: memref<3x1x128xf32, #tpu.memory_space<vmem>>, %arg5: memref<3x1x128xf32, #tpu.memory_space<vmem>>, %arg6: memref<16x128xf32, #tpu.memory_space<vmem>>) attributes {dimension_semantics = [#tpu.dimension_semantics<parallel>], iteration_bounds = array<i64: 1>, scalar_prefetch = 0 : i64, scratch_operands = 0 : i64, tpu.core_type = #tpu.core_type<tc>, window_params = [{transform_indices = @transform_0, window_bounds = array<i64: 16, 128>}, {pipeline_mode = #tpu.pipeline_mode<synchronous>, transform_indices = @transform_1, window_bounds = array<i64: 3, 128, 128>}, {pipeline_mode = #tpu.pipeline_mode<synchronous>, transform_indices = @transform_2, window_bounds = array<i64: 3, 1, 128>}, {pipeline_mode = #tpu.pipeline_mode<synchronous>, transform_indices = @transform_3, window_bounds = array<i64: 3, 1, 128>}, {pipeline_mode = #tpu.pipeline_mode<synchronous>, transform_indices = @transform_4, window_bounds = array<i64: 3, 1, 128>}, {transform_indices = @transform_5, window_bounds = array<i64: 16, 128>}]} {
    %c0 = arith.constant 0 : index
    %c0_0 = arith.constant 0 : index
    %0 = vector.load %arg1[%c0, %c0_0] : memref<16x128xf32, #tpu.memory_space<vmem>>, vector<16x128xf32>
    %1 = arith.truncf %0 : vector<16x128xf32> to vector<16x128xbf16>
    %c0_1 = arith.constant 0 : index
    %c0_2 = arith.constant 0 : index
    %c0_3 = arith.constant 0 : index
    %2 = vector.load %arg2[%c0_1, %c0_2, %c0_3] : memref<3x128x128xbf16, #tpu.memory_space<vmem>>, vector<1x128x128xbf16>
    %3 = vector.shape_cast %2 : vector<1x128x128xbf16> to vector<128x128xbf16>
    %cst = arith.constant dense<0.000000e+00> : vector<16x128xf32>
    %4 = tpu.matmul %1, %3, %cst {dimension_numbers = #tpu.dot_dimension_numbers<[1], [0], [0], [1], [0, 0, 1, 1], [], []>} : vector<16x128xbf16>, vector<128x128xbf16>, vector<16x128xf32> -> vector<16x128xf32>
    %c0_4 = arith.constant 0 : index
    %c0_5 = arith.constant 0 : index
    %c0_6 = arith.constant 0 : index
    %5 = vector.load %arg3[%c0_4, %c0_5, %c0_6] : memref<3x1x128xf32, #tpu.memory_space<vmem>>, vector<1x1x128xf32>
    %6 = vector.shape_cast %5 : vector<1x1x128xf32> to vector<1x128xf32>
    %7 = vector.broadcast %6 : vector<1x128xf32> to vector<16x128xf32>
    %8 = arith.addf %4, %7 : vector<16x128xf32>
    %9 = arith.addf %0, %8 : vector<16x128xf32>
    %cst_7 = arith.constant dense<0.000000e+00> : vector<16xf32>
    %10 = vector.multi_reduction <add>, %9, %cst_7 [1] : vector<16x128xf32> to vector<16xf32>
    %11 = vector.shape_cast %10 : vector<16xf32> to vector<16x1xf32>
    %cst_8 = arith.constant 3.125000e-02 : f32
    %12 = vector.broadcast %cst_8 : f32 to vector<16x1xf32>
    %13 = arith.mulf %11, %12 : vector<16x1xf32>
    %14 = vector.broadcast %13 : vector<16x1xf32> to vector<16x128xf32>
    %15 = arith.subf %9, %14 : vector<16x128xf32>
    %16 = arith.mulf %15, %15 : vector<16x128xf32>
    %cst_9 = arith.constant dense<0.000000e+00> : vector<16xf32>
    %17 = vector.multi_reduction <add>, %16, %cst_9 [1] : vector<16x128xf32> to vector<16xf32>
    %18 = vector.shape_cast %17 : vector<16xf32> to vector<16x1xf32>
    %19 = arith.mulf %13, %13 : vector<16x1xf32>
    %cst_10 = arith.constant 9.600000e+01 : f32
    %20 = vector.broadcast %cst_10 : f32 to vector<16x1xf32>
    %21 = arith.mulf %20, %19 : vector<16x1xf32>
    %22 = arith.subf %18, %21 : vector<16x1xf32>
    %cst_11 = arith.constant 3.125000e-02 : f32
    %23 = vector.broadcast %cst_11 : f32 to vector<16x1xf32>
    %24 = arith.mulf %22, %23 : vector<16x1xf32>
    %cst_12 = arith.constant 9.99999974E-6 : f32
    %25 = vector.broadcast %cst_12 : f32 to vector<16x1xf32>
    %26 = arith.addf %24, %25 : vector<16x1xf32>
    %27 = math.rsqrt %26 : vector<16x1xf32>
    %28 = vector.broadcast %27 : vector<16x1xf32> to vector<16x128xf32>
    %29 = arith.mulf %15, %28 : vector<16x128xf32>
    %c0_13 = arith.constant 0 : index
    %c0_14 = arith.constant 0 : index
    %c0_15 = arith.constant 0 : index
    %30 = vector.load %arg4[%c0_13, %c0_14, %c0_15] : memref<3x1x128xf32, #tpu.memory_space<vmem>>, vector<1x1x128xf32>
    %31 = vector.shape_cast %30 : vector<1x1x128xf32> to vector<1x128xf32>
    %32 = vector.broadcast %31 : vector<1x128xf32> to vector<16x128xf32>
    %33 = arith.mulf %29, %32 : vector<16x128xf32>
    %c0_16 = arith.constant 0 : index
    %c0_17 = arith.constant 0 : index
    %c0_18 = arith.constant 0 : index
    %34 = vector.load %arg5[%c0_16, %c0_17, %c0_18] : memref<3x1x128xf32, #tpu.memory_space<vmem>>, vector<1x1x128xf32>
    %35 = vector.shape_cast %34 : vector<1x1x128xf32> to vector<1x128xf32>
    %36 = vector.broadcast %35 : vector<1x128xf32> to vector<16x128xf32>
    %37 = arith.addf %33, %36 : vector<16x128xf32>
    %38 = arith.truncf %37 : vector<16x128xf32> to vector<16x128xbf16>
    %c1 = arith.constant 1 : index
    %c0_19 = arith.constant 0 : index
    %c0_20 = arith.constant 0 : index
    %39 = vector.load %arg2[%c1, %c0_19, %c0_20] : memref<3x128x128xbf16, #tpu.memory_space<vmem>>, vector<1x128x128xbf16>
    %40 = vector.shape_cast %39 : vector<1x128x128xbf16> to vector<128x128xbf16>
    %cst_21 = arith.constant dense<0.000000e+00> : vector<16x128xf32>
    %41 = tpu.matmul %38, %40, %cst_21 {dimension_numbers = #tpu.dot_dimension_numbers<[1], [0], [0], [1], [0, 0, 1, 1], [], []>} : vector<16x128xbf16>, vector<128x128xbf16>, vector<16x128xf32> -> vector<16x128xf32>
    %c1_22 = arith.constant 1 : index
    %c0_23 = arith.constant 0 : index
    %c0_24 = arith.constant 0 : index
    %42 = vector.load %arg3[%c1_22, %c0_23, %c0_24] : memref<3x1x128xf32, #tpu.memory_space<vmem>>, vector<1x1x128xf32>
    %43 = vector.shape_cast %42 : vector<1x1x128xf32> to vector<1x128xf32>
    %44 = vector.broadcast %43 : vector<1x128xf32> to vector<16x128xf32>
    %45 = arith.addf %41, %44 : vector<16x128xf32>
    %46 = arith.addf %37, %45 : vector<16x128xf32>
    %cst_25 = arith.constant dense<0.000000e+00> : vector<16xf32>
    %47 = vector.multi_reduction <add>, %46, %cst_25 [1] : vector<16x128xf32> to vector<16xf32>
    %48 = vector.shape_cast %47 : vector<16xf32> to vector<16x1xf32>
    %cst_26 = arith.constant 3.125000e-02 : f32
    %49 = vector.broadcast %cst_26 : f32 to vector<16x1xf32>
    %50 = arith.mulf %48, %49 : vector<16x1xf32>
    %51 = vector.broadcast %50 : vector<16x1xf32> to vector<16x128xf32>
    %52 = arith.subf %46, %51 : vector<16x128xf32>
    %53 = arith.mulf %52, %52 : vector<16x128xf32>
    %cst_27 = arith.constant dense<0.000000e+00> : vector<16xf32>
    %54 = vector.multi_reduction <add>, %53, %cst_27 [1] : vector<16x128xf32> to vector<16xf32>
    %55 = vector.shape_cast %54 : vector<16xf32> to vector<16x1xf32>
    %56 = arith.mulf %50, %50 : vector<16x1xf32>
    %cst_28 = arith.constant 9.600000e+01 : f32
    %57 = vector.broadcast %cst_28 : f32 to vector<16x1xf32>
    %58 = arith.mulf %57, %56 : vector<16x1xf32>
    %59 = arith.subf %55, %58 : vector<16x1xf32>
    %cst_29 = arith.constant 3.125000e-02 : f32
    %60 = vector.broadcast %cst_29 : f32 to vector<16x1xf32>
    %61 = arith.mulf %59, %60 : vector<16x1xf32>
    %cst_30 = arith.constant 9.99999974E-6 : f32
    %62 = vector.broadcast %cst_30 : f32 to vector<16x1xf32>
    %63 = arith.addf %61, %62 : vector<16x1xf32>
    %64 = math.rsqrt %63 : vector<16x1xf32>
    %65 = vector.broadcast %64 : vector<16x1xf32> to vector<16x128xf32>
    %66 = arith.mulf %52, %65 : vector<16x128xf32>
    %c1_31 = arith.constant 1 : index
    %c0_32 = arith.constant 0 : index
    %c0_33 = arith.constant 0 : index
    %67 = vector.load %arg4[%c1_31, %c0_32, %c0_33] : memref<3x1x128xf32, #tpu.memory_space<vmem>>, vector<1x1x128xf32>
    %68 = vector.shape_cast %67 : vector<1x1x128xf32> to vector<1x128xf32>
    %69 = vector.broadcast %68 : vector<1x128xf32> to vector<16x128xf32>
    %70 = arith.mulf %66, %69 : vector<16x128xf32>
    %c1_34 = arith.constant 1 : index
    %c0_35 = arith.constant 0 : index
    %c0_36 = arith.constant 0 : index
    %71 = vector.load %arg5[%c1_34, %c0_35, %c0_36] : memref<3x1x128xf32, #tpu.memory_space<vmem>>, vector<1x1x128xf32>
    %72 = vector.shape_cast %71 : vector<1x1x128xf32> to vector<1x128xf32>
    %73 = vector.broadcast %72 : vector<1x128xf32> to vector<16x128xf32>
    %74 = arith.addf %70, %73 : vector<16x128xf32>
    %75 = arith.truncf %74 : vector<16x128xf32> to vector<16x128xbf16>
    %c2 = arith.constant 2 : index
    %c0_37 = arith.constant 0 : index
    %c0_38 = arith.constant 0 : index
    %76 = vector.load %arg2[%c2, %c0_37, %c0_38] : memref<3x128x128xbf16, #tpu.memory_space<vmem>>, vector<1x128x128xbf16>
    %77 = vector.shape_cast %76 : vector<1x128x128xbf16> to vector<128x128xbf16>
    %cst_39 = arith.constant dense<0.000000e+00> : vector<16x128xf32>
    %78 = tpu.matmul %75, %77, %cst_39 {dimension_numbers = #tpu.dot_dimension_numbers<[1], [0], [0], [1], [0, 0, 1, 1], [], []>} : vector<16x128xbf16>, vector<128x128xbf16>, vector<16x128xf32> -> vector<16x128xf32>
    %c2_40 = arith.constant 2 : index
    %c0_41 = arith.constant 0 : index
    %c0_42 = arith.constant 0 : index
    %79 = vector.load %arg3[%c2_40, %c0_41, %c0_42] : memref<3x1x128xf32, #tpu.memory_space<vmem>>, vector<1x1x128xf32>
    %80 = vector.shape_cast %79 : vector<1x1x128xf32> to vector<1x128xf32>
    %81 = vector.broadcast %80 : vector<1x128xf32> to vector<16x128xf32>
    %82 = arith.addf %78, %81 : vector<16x128xf32>
    %83 = arith.addf %74, %82 : vector<16x128xf32>
    %cst_43 = arith.constant dense<0.000000e+00> : vector<16xf32>
    %84 = vector.multi_reduction <add>, %83, %cst_43 [1] : vector<16x128xf32> to vector<16xf32>
    %85 = vector.shape_cast %84 : vector<16xf32> to vector<16x1xf32>
    %cst_44 = arith.constant 3.125000e-02 : f32
    %86 = vector.broadcast %cst_44 : f32 to vector<16x1xf32>
    %87 = arith.mulf %85, %86 : vector<16x1xf32>
    %88 = vector.broadcast %87 : vector<16x1xf32> to vector<16x128xf32>
    %89 = arith.subf %83, %88 : vector<16x128xf32>
    %90 = arith.mulf %89, %89 : vector<16x128xf32>
    %cst_45 = arith.constant dense<0.000000e+00> : vector<16xf32>
    %91 = vector.multi_reduction <add>, %90, %cst_45 [1] : vector<16x128xf32> to vector<16xf32>
    %92 = vector.shape_cast %91 : vector<16xf32> to vector<16x1xf32>
    %93 = arith.mulf %87, %87 : vector<16x1xf32>
    %cst_46 = arith.constant 9.600000e+01 : f32
    %94 = vector.broadcast %cst_46 : f32 to vector<16x1xf32>
    %95 = arith.mulf %94, %93 : vector<16x1xf32>
    %96 = arith.subf %92, %95 : vector<16x1xf32>
    %cst_47 = arith.constant 3.125000e-02 : f32
    %97 = vector.broadcast %cst_47 : f32 to vector<16x1xf32>
    %98 = arith.mulf %96, %97 : vector<16x1xf32>
    %cst_48 = arith.constant 9.99999974E-6 : f32
    %99 = vector.broadcast %cst_48 : f32 to vector<16x1xf32>
    %100 = arith.addf %98, %99 : vector<16x1xf32>
    %101 = math.rsqrt %100 : vector<16x1xf32>
    %102 = vector.broadcast %101 : vector<16x1xf32> to vector<16x128xf32>
    %103 = arith.mulf %89, %102 : vector<16x128xf32>
    %c2_49 = arith.constant 2 : index
    %c0_50 = arith.constant 0 : index
    %c0_51 = arith.constant 0 : index
    %104 = vector.load %arg4[%c2_49, %c0_50, %c0_51] : memref<3x1x128xf32, #tpu.memory_space<vmem>>, vector<1x1x128xf32>
    %105 = vector.shape_cast %104 : vector<1x1x128xf32> to vector<1x128xf32>
    %106 = vector.broadcast %105 : vector<1x128xf32> to vector<16x128xf32>
    %107 = arith.mulf %103, %106 : vector<16x128xf32>
    %c2_52 = arith.constant 2 : index
    %c0_53 = arith.constant 0 : index
    %c0_54 = arith.constant 0 : index
    %108 = vector.load %arg5[%c2_52, %c0_53, %c0_54] : memref<3x1x128xf32, #tpu.memory_space<vmem>>, vector<1x1x128xf32>
    %109 = vector.shape_cast %108 : vector<1x1x128xf32> to vector<1x128xf32>
    %110 = vector.broadcast %109 : vector<1x128xf32> to vector<16x128xf32>
    %111 = arith.addf %107, %110 : vector<16x128xf32>
    %c0_55 = arith.constant 0 : index
    %c0_56 = arith.constant 0 : index
    %112 = vector.load %arg6[%c0_55, %c0_56] : memref<16x128xf32, #tpu.memory_space<vmem>>, vector<16x128xf32>
    tpu.vector_store %arg6[%c0_55, %c0_56], %111 {strides = array<i32>} : memref<16x128xf32, #tpu.memory_space<vmem>>, vector<16x128xf32>,
    return
  }
  func.func @transform_0(%arg0: i32) -> (i32, i32) {
    %c0_i32 = arith.constant 0 : i32
    %c0_i32_0 = arith.constant 0 : i32
    return %arg0, %c0_i32 : i32, i32
  }
  func.func @transform_1(%arg0: i32) -> (i32, i32, i32) {
    %c0_i32 = arith.constant 0 : i32
    %c0_i32_0 = arith.constant 0 : i32
    %c0_i32_1 = arith.constant 0 : i32
    %c0_i32_2 = arith.constant 0 : i32
    return %c0_i32, %c0_i32_0, %c0_i32_1 : i32, i32, i32
  }
  func.func @transform_2(%arg0: i32) -> (i32, i32, i32) {
    %c0_i32 = arith.constant 0 : i32
    %c0_i32_0 = arith.constant 0 : i32
    %c0_i32_1 = arith.constant 0 : i32
    %c0_i32_2 = arith.constant 0 : i32
    return %c0_i32, %c0_i32_0, %c0_i32_1 : i32, i32, i32
  }
  func.func @transform_3(%arg0: i32) -> (i32, i32, i32) {
    %c0_i32 = arith.constant 0 : i32
    %c0_i32_0 = arith.constant 0 : i32
    %c0_i32_1 = arith.constant 0 : i32
    %c0_i32_2 = arith.constant 0 : i32
    return %c0_i32, %c0_i32_0, %c0_i32_1 : i32, i32, i32
  }
  func.func @transform_4(%arg0: i32) -> (i32, i32, i32) {
    %c0_i32 = arith.constant 0 : i32
    %c0_i32_0 = arith.constant 0 : i32
    %c0_i32_1 = arith.constant 0 : i32
    %c0_i32_2 = arith.constant 0 : i32
    return %c0_i32, %c0_i32_0, %c0_i32_1 : i32, i32, i32
  }
  func.func @transform_5(%arg0: i32) -> (i32, i32) {
    %c0_i32 = arith.constant 0 : i32
    %c0_i32_0 = arith.constant 0 : i32
    return %arg0, %c0_i32 : i32, i32
  }
}

</mosaic_0001>

<llo_original>
// kernel: tpu_custom_call.1
$region0: #{tpu_custom_call.1}
  #allocation0 [shape = 'u32[]', space=smem, size = 0x4, offset = 0x4, fixed_abs, tag = 'smem constant byte address 0x4 - core index']
  #allocation1 [shape = 'u32[144,128]{1,0:T(1,128)}', space=vmem, size = 0x12000, scoped, tag = 'internal scratch']
  %s0 = inlined_call_operand.hbm [shape: f32[16,128], index: 0, kind: input, shape index: {}, may-alias: {0,5}]
  %s1 = inlined_call_operand.hbm [shape: bf16[3,128,128], index: 1, kind: input, shape index: {}]
  %s2 = inlined_call_operand.vmem [shape: f32[3,1,128], index: 2, kind: input, shape index: {}]
  %s3 = inlined_call_operand.vmem [shape: f32[3,1,128], index: 3, kind: input, shape index: {}]
  %s4 = inlined_call_operand.vmem [shape: f32[3,1,128], index: 4, kind: input, shape index: {}]
  %s5 = inlined_call_operand.hbm [shape: f32[16,128], index: 5, kind: output, shape index: {}, may-alias: {0,5}]
  %s6 = sld [smem:[#allocation0]]
  $region38: #{tpu_custom_call.1} parent=0
    _
  %s8 = ssub.s32 1, %s6
  %s9 = scalar_select 0, %s8, %s6
  $region1: #{tpu_custom_call.1} parent=0
    #allocation2 [shape = 'u8[8192]{0}', space=vmem, size = 0x2000, scoped, tag = 'input window, operand 0, single buffered']
    #allocation3 [shape = 's32[1]{0}', space=sflag, size = 0x4, scoped, tag = 'scoped memory for tpu_custom_call.1']
    #allocation4 [shape = 's32[1]{0}', space=sflag, size = 0x4, scoped, tag = 'scoped memory for tpu_custom_call.1']
    #allocation5 [shape = 'u8[98304]{0}', space=vmem, size = 0x18000, scoped, tag = 'input window, operand 1, single buffered']
    #allocation6 [shape = 's32[1]{0}', space=sflag, size = 0x4, scoped, tag = 'scoped memory for tpu_custom_call.1']
    #allocation7 [shape = 'u8[8192]{0}', space=vmem, size = 0x2000, scoped, tag = 'output window, operand 0, single buffered']
    %10 = vsyncpa [#allocation3], 0
    %11 = vsyncpa [#allocation6], 0
    %12 = vsyncpa [#allocation4], 0
    // Predicated region
    $region2: #{tpu_custom_call.1} parent=1 // pred_check
      _
    $region3: #{tpu_custom_call.1} parent=1 // pred_check_branch
      %14 = sbr.rel (0) target = $region5
    $region4: #{tpu_custom_call.1} parent=1 // pred_region
      %s16 = ssub.s32 256, 256
      %17 = vsyncadd [#allocation3], %s16
      %s18 = sshll.u32 [#allocation2], 4
      %s19 = int_to_ptr.vmem [resolvable:$true] %s18
      %24 = dma.hbm_to_vmem [thread:$0]  %s0, 256, %s19, [#allocation3], 128, 128, 8
    $region5: #{tpu_custom_call.1} parent=1 // pred_fallthru
      _
    // Predicated region
    $region6: #{tpu_custom_call.1} parent=1 // pred_check
      _
    $region7: #{tpu_custom_call.1} parent=1 // pred_check_branch
      %26 = sbr.rel (0) target = $region9
    $region8: #{tpu_custom_call.1} parent=1 // pred_region
      %s28 = ssub.s32 3072, 3072
      %29 = vsyncadd [#allocation6], %s28
      %s30 = sshll.u32 [#allocation5], 4
      %s31 = int_to_ptr.vmem [resolvable:$true] %s30
      %36 = dma.hbm_to_vmem [thread:$0]  %s1, 3072, %s31, [#allocation6], 64, 64, 4
    $region9: #{tpu_custom_call.1} parent=1 // pred_fallthru
      _
    // Predicated region
    $region10: #{tpu_custom_call.1} parent=1 // pred_check
      _
    $region11: #{tpu_custom_call.1} parent=1 // pred_check_branch
      %38 = sbr.rel (0) target = $region13
    $region12: #{tpu_custom_call.1} parent=1 // pred_region
      _
    $region13: #{tpu_custom_call.1} parent=1 // pred_fallthru
      _
    // Predicated region
    $region14: #{tpu_custom_call.1} parent=1 // pred_check
      _
    $region15: #{tpu_custom_call.1} parent=1 // pred_check_branch
      %40 = sbr.rel (0) target = $region17
    $region16: #{tpu_custom_call.1} parent=1 // pred_region
      _
    $region17: #{tpu_custom_call.1} parent=1 // pred_fallthru
      _
    // Predicated region
    $region18: #{tpu_custom_call.1} parent=1 // pred_check
      _
    $region19: #{tpu_custom_call.1} parent=1 // pred_check_branch
      %42 = sbr.rel (0) target = $region21
    $region20: #{tpu_custom_call.1} parent=1 // pred_region
      _
    $region21: #{tpu_custom_call.1} parent=1 // pred_fallthru
      _
    // Predicated region
    $region22: #{tpu_custom_call.1} parent=1 // pred_check
      _
    $region23: #{tpu_custom_call.1} parent=1 // pred_check_branch
      %44 = sbr.rel (0) target = $region25
    $region24: #{tpu_custom_call.1} parent=1 // pred_region
      %45 = dma.done [#allocation3], 256
    $region25: #{tpu_custom_call.1} parent=1 // pred_fallthru
      _
    // Predicated region
    $region26: #{tpu_custom_call.1} parent=1 // pred_check
      _
    $region27: #{tpu_custom_call.1} parent=1 // pred_check_branch
      %47 = sbr.rel (0) target = $region29
    $region28: #{tpu_custom_call.1} parent=1 // pred_region
      %48 = dma.done [#allocation6], 3072
    $region29: #{tpu_custom_call.1} parent=1 // pred_fallthru
      _
    %v50 = vld [vmem:[#allocation2] sm:$0xff]
    %v51 = vld [vmem:[#allocation2 + $0x8] sm:$0xff]
    %v52 = vpack.c.bf16 %v51, %v50
    %v53 = vld [vmem:[#allocation5] sm:$0xf]
    %v54 = vld [vmem:[#allocation5 + $0x4] sm:$0xf]
    %v55 = vld [vmem:[#allocation5 + $0x8] sm:$0xf]
    %v56 = vld [vmem:[#allocation5 + $0xc] sm:$0xf]
    %v57 = vld [vmem:[#allocation5 + $0x10] sm:$0xf]
    %v58 = vld [vmem:[#allocation5 + $0x14] sm:$0xf]
    %v59 = vld [vmem:[#allocation5 + $0x18] sm:$0xf]
    %v60 = vld [vmem:[#allocation5 + $0x1c] sm:$0xf]
    %v61 = vld [vmem:[#allocation5 + $0x20] sm:$0xf]
    %v62 = vld [vmem:[#allocation5 + $0x24] sm:$0xf]
    %v63 = vld [vmem:[#allocation5 + $0x28] sm:$0xf]
    %v64 = vld [vmem:[#allocation5 + $0x2c] sm:$0xf]
    %v65 = vld [vmem:[#allocation5 + $0x30] sm:$0xf]
    %v66 = vld [vmem:[#allocation5 + $0x34] sm:$0xf]
    %v67 = vld [vmem:[#allocation5 + $0x38] sm:$0xf]
    %v68 = vld [vmem:[#allocation5 + $0x3c] sm:$0xf]
    %v69 = vld [vmem:[%s2] sm:$0x1]
    %v71 = vlaneseq
    %v72 = vshrl.u32 %v71, 7
    %v73 = vsub.s32 0, %v72
    %v74 = vrot.slane %v69, %v73
    %v92 = vunpack.c.l.b16 %v53
    %v93 = vunpack.c.l.b16 %v54
    %v94 = vunpack.c.l.b16 %v55
    %v95 = vunpack.c.l.b16 %v56
    %v96 = vunpack.c.l.b16 %v57
    %v97 = vunpack.c.l.b16 %v58
    %v98 = vunpack.c.l.b16 %v59
    %v99 = vunpack.c.l.b16 %v60
    %v100 = vunpack.c.l.b16 %v61
    %v101 = vunpack.c.l.b16 %v62
    %v102 = vunpack.c.l.b16 %v63
    %v103 = vunpack.c.l.b16 %v64
    %v104 = vunpack.c.l.b16 %v65
    %v105 = vunpack.c.l.b16 %v66
    %v106 = vunpack.c.l.b16 %v67
    %v107 = vunpack.c.l.b16 %v68
    %v108 = vpack.c.b16 %v93, %v92
    %v109 = vpack.c.b16 %v95, %v94
    %v110 = vpack.c.b16 %v97, %v96
    %v111 = vpack.c.b16 %v99, %v98
    %v112 = vpack.c.b16 %v101, %v100
    %v113 = vpack.c.b16 %v103, %v102
    %v114 = vpack.c.b16 %v105, %v104
    %v115 = vpack.c.b16 %v107, %v106
    %124 = vmatprep.subr.bf16.mxu0 0
    %125 = vmatpush1.bf16.msra.mxu0 %v115
    %126 = vmatprep.subr.bf16.mxu0 0
    %127 = vmatpush1.bf16.msra.mxu0 %v114
    %128 = vmatprep.subr.bf16.mxu0 0
    %129 = vmatpush1.bf16.msra.mxu0 %v113
    %130 = vmatprep.subr.bf16.mxu0 0
    %131 = vmatpush1.bf16.msra.mxu0 %v112
    %132 = vmatprep.subr.bf16.mxu0 0
    %133 = vmatpush1.bf16.msra.mxu0 %v111
    %134 = vmatprep.subr.bf16.mxu0 0
    %135 = vmatpush1.bf16.msra.mxu0 %v110
    %136 = vmatprep.subr.bf16.mxu0 0
    %137 = vmatpush1.bf16.msra.mxu0 %v109
    %138 = vmatprep.subr.bf16.mxu0 0
    %139 = vmatpush1.bf16.msra.mxu0 %v108
    %140 = vmatprep.subr.bf16.mxu0 0
    %141 = vmatpush2.bf16.msra.mxu0 0
    %142 = vmatprep.subr.bf16.mxu0 0
    %143 = vmatpush2.bf16.msra.mxu0 0
    %144 = vmatprep.subr.bf16.mxu0 0
    %145 = vmatpush2.bf16.msra.mxu0 0
    %146 = vmatprep.subr.bf16.mxu0 0
    %147 = vmatpush2.bf16.msra.mxu0 0
    %148 = vmatprep.subr.bf16.mxu0 0
    %149 = vmatpush2.bf16.msra.mxu0 0
    %150 = vmatprep.subr.bf16.mxu0 0
    %151 = vmatpush2.bf16.msra.mxu0 0
    %152 = vmatprep.subr.bf16.mxu0 0
    %153 = vmatpush2.bf16.msra.mxu0 0
    %154 = vmatprep.subr.bf16.mxu0 0
    %155 = vmatpush2.bf16.msra.mxu0 0
    %156 = vmatprep.mubr.bf16.mxu0 0
    %157 = vmatmul.mubr.bf16.gmra.mxu0 %v52
    %v158 = vpop.f32.mrf.mxu0
    %v159 = vadd.f32 %v74, %v158
    %v160 = vpop.f32.mrf.mxu0
    %v161 = vpop.f32.mrf.mxu0
    %v162 = vadd.f32 %v74, %v161
    %v163 = vpop.f32.mrf.mxu0
    %164 = vdwg.mxu0
    %v165 = vadd.f32 %v50, %v159
    %v166 = vadd.f32 %v51, %v162
    %167 = vadd.xlane.f32.xlu0 %v165
    %v168 = vpop.xlane.xlu0 %167
    %169 = vadd.xlane.f32.xlu0 %v166
    %v170 = vpop.xlane.xlu0 %169
    %v171 = vmul.f32 %v168, 0.03125
    %v172 = vmul.f32 %v170, 0.03125
    %v173 = vsub.f32 %v165, %v171
    %v174 = vsub.f32 %v166, %v172
    %v175 = vmul.f32 %v173, %v173
    %v176 = vmul.f32 %v174, %v174
    %177 = vadd.xlane.f32.xlu0 %v175
    %v178 = vpop.xlane.xlu0 %177
    %179 = vadd.xlane.f32.xlu0 %v176
    %v180 = vpop.xlane.xlu0 %179
    %v181 = vmul.f32 %v171, %v171
    %v182 = vmul.f32 %v172, %v172
    %v183 = vmul.f32 %v181, 96.0
    %v184 = vmul.f32 %v182, 96.0
    %v185 = vsub.f32 %v178, %v183
    %v186 = vsub.f32 %v180, %v184
    %v187 = vmul.f32 %v185, 0.03125
    %v188 = vmul.f32 %v186, 0.03125
    %v189 = vadd.f32 %v187, 1e-05
    %v190 = vadd.f32 %v188, 1e-05
    %v191 = vrsqrt.pop %v189
    %v192 = vrsqrt.pop %v190
    %v193 = vmul.f32 %v173, %v191
    %v194 = vmul.f32 %v174, %v192
    %v195 = vld [vmem:[%s3] sm:$0x1]
    %v197 = vlaneseq
    %v198 = vshrl.u32 %v197, 7
    %v199 = vsub.s32 0, %v198
    %v200 = vrot.slane %v195, %v199
    %v202 = vmul.f32 %v193, %v200
    %v203 = vmul.f32 %v194, %v200
    %v204 = vld [vmem:[%s4] sm:$0x1]
    %v206 = vlaneseq
    %v207 = vshrl.u32 %v206, 7
    %v208 = vsub.s32 0, %v207
    %v209 = vrot.slane %v204, %v208
    %v211 = vadd.f32 %v202, %v209
    %v212 = vadd.f32 %v203, %v209
    %v213 = vpack.c.bf16 %v212, %v211
    %s214 = scalar_lea.vmem [#allocation5], 64
    %v215 = vld [vmem:[%s214] sm:$0xf]
    %v216 = vld [vmem:[%s214 + $0x4] sm:$0xf]
    %v217 = vld [vmem:[%s214 + $0x8] sm:$0xf]
    %v218 = vld [vmem:[%s214 + $0xc] sm:$0xf]
    %v219 = vld [vmem:[%s214 + $0x10] sm:$0xf]
    %v220 = vld [vmem:[%s214 + $0x14] sm:$0xf]
    %v221 = vld [vmem:[%s214 + $0x18] sm:$0xf]
    %v222 = vld [vmem:[%s214 + $0x1c] sm:$0xf]
    %v223 = vld [vmem:[%s214 + $0x20] sm:$0xf]
    %v224 = vld [vmem:[%s214 + $0x24] sm:$0xf]
    %v225 = vld [vmem:[%s214 + $0x28] sm:$0xf]
    %v226 = vld [vmem:[%s214 + $0x2c] sm:$0xf]
    %v227 = vld [vmem:[%s214 + $0x30] sm:$0xf]
    %v228 = vld [vmem:[%s214 + $0x34] sm:$0xf]
    %v229 = vld [vmem:[%s214 + $0x38] sm:$0xf]
    %v230 = vld [vmem:[%s214 + $0x3c] sm:$0xf]
    %s231 = scalar_lea.vmem %s2, 1
    %v232 = vld [vmem:[%s231] sm:$0x1]
    %v234 = vlaneseq
    %v235 = vshrl.u32 %v234, 7
    %v236 = vsub.s32 0, %v235
    %v237 = vrot.slane %v232, %v236
    %v255 = vunpack.c.l.b16 %v215
    %v256 = vunpack.c.l.b16 %v216
    %v257 = vunpack.c.l.b16 %v217
    %v258 = vunpack.c.l.b16 %v218
    %v259 = vunpack.c.l.b16 %v219
    %v260 = vunpack.c.l.b16 %v220
    %v261 = vunpack.c.l.b16 %v221
    %v262 = vunpack.c.l.b16 %v222
    %v263 = vunpack.c.l.b16 %v223
    %v264 = vunpack.c.l.b16 %v224
    %v265 = vunpack.c.l.b16 %v225
    %v266 = vunpack.c.l.b16 %v226
    %v267 = vunpack.c.l.b16 %v227
    %v268 = vunpack.c.l.b16 %v228
    %v269 = vunpack.c.l.b16 %v229
    %v270 = vunpack.c.l.b16 %v230
    %v271 = vpack.c.b16 %v256, %v255
    %v272 = vpack.c.b16 %v258, %v257
    %v273 = vpack.c.b16 %v260, %v259
    %v274 = vpack.c.b16 %v262, %v261
    %v275 = vpack.c.b16 %v264, %v263
    %v276 = vpack.c.b16 %v266, %v265
    %v277 = vpack.c.b16 %v268, %v267
    %v278 = vpack.c.b16 %v270, %v269
    %287 = vmatprep.subr.bf16.mxu0 0
    %288 = vmatpush1.bf16.msra.mxu0 %v278
    %289 = vmatprep.subr.bf16.mxu0 0
    %290 = vmatpush1.bf16.msra.mxu0 %v277
    %291 = vmatprep.subr.bf16.mxu0 0
    %292 = vmatpush1.bf16.msra.mxu0 %v276
    %293 = vmatprep.subr.bf16.mxu0 0
    %294 = vmatpush1.bf16.msra.mxu0 %v275
    %295 = vmatprep.subr.bf16.mxu0 0
    %296 = vmatpush1.bf16.msra.mxu0 %v274
    %297 = vmatprep.subr.bf16.mxu0 0
    %298 = vmatpush1.bf16.msra.mxu0 %v273
    %299 = vmatprep.subr.bf16.mxu0 0
    %300 = vmatpush1.bf16.msra.mxu0 %v272
    %301 = vmatprep.subr.bf16.mxu0 0
    %302 = vmatpush1.bf16.msra.mxu0 %v271
    %303 = vmatprep.subr.bf16.mxu0 0
    %304 = vmatpush2.bf16.msra.mxu0 0
    %305 = vmatprep.subr.bf16.mxu0 0
    %306 = vmatpush2.bf16.msra.mxu0 0
    %307 = vmatprep.subr.bf16.mxu0 0
    %308 = vmatpush2.bf16.msra.mxu0 0
    %309 = vmatprep.subr.bf16.mxu0 0
    %310 = vmatpush2.bf16.msra.mxu0 0
    %311 = vmatprep.subr.bf16.mxu0 0
    %312 = vmatpush2.bf16.msra.mxu0 0
    %313 = vmatprep.subr.bf16.mxu0 0
    %314 = vmatpush2.bf16.msra.mxu0 0
    %315 = vmatprep.subr.bf16.mxu0 0
    %316 = vmatpush2.bf16.msra.mxu0 0
    %317 = vmatprep.subr.bf16.mxu0 0
    %318 = vmatpush2.bf16.msra.mxu0 0
    %319 = vmatprep.mubr.bf16.mxu0 0
    %320 = vmatmul.mubr.bf16.gmra.mxu0 %v213
    %v321 = vpop.f32.mrf.mxu0
    %v322 = vadd.f32 %v237, %v321
    %v323 = vpop.f32.mrf.mxu0
    %v324 = vpop.f32.mrf.mxu0
    %v325 = vadd.f32 %v237, %v324
    %v326 = vpop.f32.mrf.mxu0
    %327 = vdwg.mxu0
    %v328 = vadd.f32 %v211, %v322
    %v329 = vadd.f32 %v212, %v325
    %330 = vadd.xlane.f32.xlu0 %v328
    %v331 = vpop.xlane.xlu0 %330
    %332 = vadd.xlane.f32.xlu0 %v329
    %v333 = vpop.xlane.xlu0 %332
    %v334 = vmul.f32 %v331, 0.03125
    %v335 = vmul.f32 %v333, 0.03125
    %v336 = vsub.f32 %v328, %v334
    %v337 = vsub.f32 %v329, %v335
    %v338 = vmul.f32 %v336, %v336
    %v339 = vmul.f32 %v337, %v337
    %340 = vadd.xlane.f32.xlu0 %v338
    %v341 = vpop.xlane.xlu0 %340
    %342 = vadd.xlane.f32.xlu0 %v339
    %v343 = vpop.xlane.xlu0 %342
    %v344 = vmul.f32 %v334, %v334
    %v345 = vmul.f32 %v335, %v335
    %v346 = vmul.f32 %v344, 96.0
    %v347 = vmul.f32 %v345, 96.0
    %v348 = vsub.f32 %v341, %v346
    %v349 = vsub.f32 %v343, %v347
    %v350 = vmul.f32 %v348, 0.03125
    %v351 = vmul.f32 %v349, 0.03125
    %v352 = vadd.f32 %v350, 1e-05
    %v353 = vadd.f32 %v351, 1e-05
    %v354 = vrsqrt.pop %v352
    %v355 = vrsqrt.pop %v353
    %v356 = vmul.f32 %v336, %v354
    %v357 = vmul.f32 %v337, %v355
    %s358 = scalar_lea.vmem %s3, 1
    %v359 = vld [vmem:[%s358] sm:$0x1]
    %v361 = vlaneseq
    %v362 = vshrl.u32 %v361, 7
    %v363 = vsub.s32 0, %v362
    %v364 = vrot.slane %v359, %v363
    %v366 = vmul.f32 %v356, %v364
    %v367 = vmul.f32 %v357, %v364
    %s368 = scalar_lea.vmem %s4, 1
    %v369 = vld [vmem:[%s368] sm:$0x1]
    %v371 = vlaneseq
    %v372 = vshrl.u32 %v371, 7
    %v373 = vsub.s32 0, %v372
    %v374 = vrot.slane %v369, %v373
    %v376 = vadd.f32 %v366, %v374
    %v377 = vadd.f32 %v367, %v374
    %v378 = vpack.c.bf16 %v377, %v376
    %s379 = scalar_lea.vmem [#allocation5], 128
    %v380 = vld [vmem:[%s379] sm:$0xf]
    %v381 = vld [vmem:[%s379 + $0x4] sm:$0xf]
    %v382 = vld [vmem:[%s379 + $0x8] sm:$0xf]
    %v383 = vld [vmem:[%s379 + $0xc] sm:$0xf]
    %v384 = vld [vmem:[%s379 + $0x10] sm:$0xf]
    %v385 = vld [vmem:[%s379 + $0x14] sm:$0xf]
    %v386 = vld [vmem:[%s379 + $0x18] sm:$0xf]
    %v387 = vld [vmem:[%s379 + $0x1c] sm:$0xf]
    %v388 = vld [vmem:[%s379 + $0x20] sm:$0xf]
    %v389 = vld [vmem:[%s379 + $0x24] sm:$0xf]
    %v390 = vld [vmem:[%s379 + $0x28] sm:$0xf]
    %v391 = vld [vmem:[%s379 + $0x2c] sm:$0xf]
    %v392 = vld [vmem:[%s379 + $0x30] sm:$0xf]
    %v393 = vld [vmem:[%s379 + $0x34] sm:$0xf]
    %v394 = vld [vmem:[%s379 + $0x38] sm:$0xf]
    %v395 = vld [vmem:[%s379 + $0x3c] sm:$0xf]
    %s396 = scalar_lea.vmem %s2, 2
    %v397 = vld [vmem:[%s396] sm:$0x1]
    %v399 = vlaneseq
    %v400 = vshrl.u32 %v399, 7
    %v401 = vsub.s32 0, %v400
    %v402 = vrot.slane %v397, %v401
    %v420 = vunpack.c.l.b16 %v380
    %v421 = vunpack.c.l.b16 %v381
    %v422 = vunpack.c.l.b16 %v382
    %v423 = vunpack.c.l.b16 %v383
    %v424 = vunpack.c.l.b16 %v384
    %v425 = vunpack.c.l.b16 %v385
    %v426 = vunpack.c.l.b16 %v386
    %v427 = vunpack.c.l.b16 %v387
    %v428 = vunpack.c.l.b16 %v388
    %v429 = vunpack.c.l.b16 %v389
    %v430 = vunpack.c.l.b16 %v390
    %v431 = vunpack.c.l.b16 %v391
    %v432 = vunpack.c.l.b16 %v392
    %v433 = vunpack.c.l.b16 %v393
    %v434 = vunpack.c.l.b16 %v394
    %v435 = vunpack.c.l.b16 %v395
    %v436 = vpack.c.b16 %v421, %v420
    %v437 = vpack.c.b16 %v423, %v422
    %v438 = vpack.c.b16 %v425, %v424
    %v439 = vpack.c.b16 %v427, %v426
    %v440 = vpack.c.b16 %v429, %v428
    %v441 = vpack.c.b16 %v431, %v430
    %v442 = vpack.c.b16 %v433, %v432
    %v443 = vpack.c.b16 %v435, %v434
    %452 = vmatprep.subr.bf16.mxu0 0
    %453 = vmatpush1.bf16.msra.mxu0 %v443
    %454 = vmatprep.subr.bf16.mxu0 0
    %455 = vmatpush1.bf16.msra.mxu0 %v442
    %456 = vmatprep.subr.bf16.mxu0 0
    %457 = vmatpush1.bf16.msra.mxu0 %v441
    %458 = vmatprep.subr.bf16.mxu0 0
    %459 = vmatpush1.bf16.msra.mxu0 %v440
    %460 = vmatprep.subr.bf16.mxu0 0
    %461 = vmatpush1.bf16.msra.mxu0 %v439
    %462 = vmatprep.subr.bf16.mxu0 0
    %463 = vmatpush1.bf16.msra.mxu0 %v438
    %464 = vmatprep.subr.bf16.mxu0 0
    %465 = vmatpush1.bf16.msra.mxu0 %v437
    %466 = vmatprep.subr.bf16.mxu0 0
    %467 = vmatpush1.bf16.msra.mxu0 %v436
    %468 = vmatprep.subr.bf16.mxu0 0
    %469 = vmatpush2.bf16.msra.mxu0 0
    %470 = vmatprep.subr.bf16.mxu0 0
    %471 = vmatpush2.bf16.msra.mxu0 0
    %472 = vmatprep.subr.bf16.mxu0 0
    %473 = vmatpush2.bf16.msra.mxu0 0
    %474 = vmatprep.subr.bf16.mxu0 0
    %475 = vmatpush2.bf16.msra.mxu0 0
    %476 = vmatprep.subr.bf16.mxu0 0
    %477 = vmatpush2.bf16.msra.mxu0 0
    %478 = vmatprep.subr.bf16.mxu0 0
    %479 = vmatpush2.bf16.msra.mxu0 0
    %480 = vmatprep.subr.bf16.mxu0 0
    %481 = vmatpush2.bf16.msra.mxu0 0
    %482 = vmatprep.subr.bf16.mxu0 0
    %483 = vmatpush2.bf16.msra.mxu0 0
    %484 = vmatprep.mubr.bf16.mxu0 0
    %485 = vmatmul.mubr.bf16.gmra.mxu0 %v378
    %v486 = vpop.f32.mrf.mxu0
    %v487 = vadd.f32 %v402, %v486
    %v488 = vpop.f32.mrf.mxu0
    %v489 = vpop.f32.mrf.mxu0
    %v490 = vadd.f32 %v402, %v489
    %v491 = vpop.f32.mrf.mxu0
    %492 = vdwg.mxu0
    %v493 = vadd.f32 %v376, %v487
    %v494 = vadd.f32 %v377, %v490
    %495 = vadd.xlane.f32.xlu0 %v493
    %v496 = vpop.xlane.xlu0 %495
    %497 = vadd.xlane.f32.xlu0 %v494
    %v498 = vpop.xlane.xlu0 %497
    %v499 = vmul.f32 %v496, 0.03125
    %v500 = vmul.f32 %v498, 0.03125
    %v501 = vsub.f32 %v493, %v499
    %v502 = vsub.f32 %v494, %v500
    %v503 = vmul.f32 %v501, %v501
    %v504 = vmul.f32 %v502, %v502
    %505 = vadd.xlane.f32.xlu0 %v503
    %v506 = vpop.xlane.xlu0 %505
    %507 = vadd.xlane.f32.xlu0 %v504
    %v508 = vpop.xlane.xlu0 %507
    %v509 = vmul.f32 %v499, %v499
    %v510 = vmul.f32 %v500, %v500
    %v511 = vmul.f32 %v509, 96.0
    %v512 = vmul.f32 %v510, 96.0
    %v513 = vsub.f32 %v506, %v511
    %v514 = vsub.f32 %v508, %v512
    %v515 = vmul.f32 %v513, 0.03125
    %v516 = vmul.f32 %v514, 0.03125
    %v517 = vadd.f32 %v515, 1e-05
    %v518 = vadd.f32 %v516, 1e-05
    %v519 = vrsqrt.pop %v517
    %v520 = vrsqrt.pop %v518
    %v521 = vmul.f32 %v501, %v519
    %v522 = vmul.f32 %v502, %v520
    %s523 = scalar_lea.vmem %s3, 2
    %v524 = vld [vmem:[%s523] sm:$0x1]
    %v526 = vlaneseq
    %v527 = vshrl.u32 %v526, 7
    %v528 = vsub.s32 0, %v527
    %v529 = vrot.slane %v524, %v528
    %v531 = vmul.f32 %v521, %v529
    %v532 = vmul.f32 %v522, %v529
    %s533 = scalar_lea.vmem %s4, 2
    %v534 = vld [vmem:[%s533] sm:$0x1]
    %v536 = vlaneseq
    %v537 = vshrl.u32 %v536, 7
    %v538 = vsub.s32 0, %v537
    %v539 = vrot.slane %v534, %v538
    %v541 = vadd.f32 %v531, %v539
    %v542 = vadd.f32 %v532, %v539
    %543 = vst [vmem:[#allocation7] sm:$0xff] %v541
    %544 = vst [vmem:[#allocation7 + $0x8] sm:$0xff] %v542
    // Predicated region
    $region30: #{tpu_custom_call.1} parent=1 // pred_check
      _
    $region31: #{tpu_custom_call.1} parent=1 // pred_check_branch
      %546 = sbr.rel (0) target = $region33
    $region32: #{tpu_custom_call.1} parent=1 // pred_region
      %s548 = ssub.s32 256, 256
      %549 = vsyncadd [#allocation4], %s548
      %s550 = sshll.u32 [#allocation7], 4
      %s551 = int_to_ptr.vmem [resolvable:$true] %s550
      %556 = dma.vmem_to_hbm [thread:$0]  %s551, 256, %s5, [#allocation4], 128, 128, 8
    $region33: #{tpu_custom_call.1} parent=1 // pred_fallthru
      _
    // Predicated region
    $region34: #{tpu_custom_call.1} parent=1 // pred_check
      _
    $region35: #{tpu_custom_call.1} parent=1 // pred_check_branch
      %558 = sbr.rel (0) target = $region37
    $region36: #{tpu_custom_call.1} parent=1 // pred_region
      %559 = dma.done [#allocation4], 256
    $region37: #{tpu_custom_call.1} parent=1 // pred_fallthru
      _
    %560 = vsyncpa [#allocation3], 1
    %561 = vsyncpa [#allocation6], 1
    %562 = vsyncpa [#allocation4], 1

// kernel: tpu_custom_call.1
$region0: #{tpu_custom_call.1}
  #allocation0 [shape = 'u32[]', space=smem, size = 0x4, offset = 0x4, fixed_abs, tag = 'smem constant byte address 0x4 - core index']
  #allocation1 [shape = 'u32[144,128]{1,0:T(1,128)}', space=vmem, size = 0x12000, scoped, tag = 'internal scratch']
  %s0 = inlined_call_operand.hbm [shape: f32[16,128], index: 0, kind: input, shape index: {}, may-alias: {0,5}]
  %s1 = inlined_call_operand.hbm [shape: bf16[3,128,128], index: 1, kind: input, shape index: {}]
  %s2 = inlined_call_operand.vmem [shape: f32[3,1,128], index: 2, kind: input, shape index: {}]
  %s3 = inlined_call_operand.vmem [shape: f32[3,1,128], index: 3, kind: input, shape index: {}]
  %s4 = inlined_call_operand.vmem [shape: f32[3,1,128], index: 4, kind: input, shape index: {}]
  %s5 = inlined_call_operand.hbm [shape: f32[16,128], index: 5, kind: output, shape index: {}, may-alias: {0,5}]
  %s6 = sld [smem:[#allocation0]]
  $region38: #{tpu_custom_call.1} parent=0
    _
  %s8 = ssub.s32 1, %s6
  %s9 = scalar_select 0, %s8, %s6
  $region1: #{tpu_custom_call.1} parent=0
    #allocation2 [shape = 'u8[8192]{0}', space=vmem, size = 0x2000, scoped, tag = 'input window, operand 0, single buffered']
    #allocation3 [shape = 's32[1]{0}', space=sflag, size = 0x4, scoped, tag = 'scoped memory for tpu_custom_call.1']
    #allocation4 [shape = 's32[1]{0}', space=sflag, size = 0x4, scoped, tag = 'scoped memory for tpu_custom_call.1']
    #allocation5 [shape = 'u8[98304]{0}', space=vmem, size = 0x18000, scoped, tag = 'input window, operand 1, single buffered']
    #allocation6 [shape = 's32[1]{0}', space=sflag, size = 0x4, scoped, tag = 'scoped memory for tpu_custom_call.1']
    #allocation7 [shape = 'u8[8192]{0}', space=vmem, size = 0x2000, scoped, tag = 'output window, operand 0, single buffered']
    %10 = vsyncpa [#allocation3], 0
    %11 = vsyncpa [#allocation6], 0
    %12 = vsyncpa [#allocation4], 0
    // Predicated region
    $region2: #{tpu_custom_call.1} parent=1 // pred_check
      _
    $region3: #{tpu_custom_call.1} parent=1 // pred_check_branch
      %14 = sbr.rel (0) target = $region5
    $region4: #{tpu_custom_call.1} parent=1 // pred_region
      %s16 = ssub.s32 256, 256
      %17 = vsyncadd [#allocation3], %s16
      %s18 = sshll.u32 [#allocation2], 4
      %s19 = int_to_ptr.vmem [resolvable:$true] %s18
      %24 = dma.hbm_to_vmem [thread:$0]  %s0, 256, %s19, [#allocation3], 128, 128, 8
    $region5: #{tpu_custom_call.1} parent=1 // pred_fallthru
      _
    // Predicated region
    $region6: #{tpu_custom_call.1} parent=1 // pred_check
      _
    $region7: #{tpu_custom_call.1} parent=1 // pred_check_branch
      %26 = sbr.rel (0) target = $region9
    $region8: #{tpu_custom_call.1} parent=1 // pred_region
      %s28 = ssub.s32 3072, 3072
      %29 = vsyncadd [#allocation6], %s28
      %s30 = sshll.u32 [#allocation5], 4
      %s31 = int_to_ptr.vmem [resolvable:$true] %s30
      %36 = dma.hbm_to_vmem [thread:$0]  %s1, 3072, %s31, [#allocation6], 64, 64, 4
    $region9: #{tpu_custom_call.1} parent=1 // pred_fallthru
      _
    // Predicated region
    $region10: #{tpu_custom_call.1} parent=1 // pred_check
      _
    $region11: #{tpu_custom_call.1} parent=1 // pred_check_branch
      %38 = sbr.rel (0) target = $region13
    $region12: #{tpu_custom_call.1} parent=1 // pred_region
      _
    $region13: #{tpu_custom_call.1} parent=1 // pred_fallthru
      _
    // Predicated region
    $region14: #{tpu_custom_call.1} parent=1 // pred_check
      _
    $region15: #{tpu_custom_call.1} parent=1 // pred_check_branch
      %40 = sbr.rel (0) target = $region17
    $region16: #{tpu_custom_call.1} parent=1 // pred_region
      _
    $region17: #{tpu_custom_call.1} parent=1 // pred_fallthru
      _
    // Predicated region
    $region18: #{tpu_custom_call.1} parent=1 // pred_check
      _
    $region19: #{tpu_custom_call.1} parent=1 // pred_check_branch
      %42 = sbr.rel (0) target = $region21
    $region20: #{tpu_custom_call.1} parent=1 // pred_region
      _
    $region21: #{tpu_custom_call.1} parent=1 // pred_fallthru
      _
    // Predicated region
    $region22: #{tpu_custom_call.1} parent=1 // pred_check
      _
    $region23: #{tpu_custom_call.1} parent=1 // pred_check_branch
      %44 = sbr.rel (0) target = $region25
    $region24: #{tpu_custom_call.1} parent=1 // pred_region
      %45 = dma.done [#allocation3], 256
    $region25: #{tpu_custom_call.1} parent=1 // pred_fallthru
      _
    // Predicated region
    $region26: #{tpu_custom_call.1} parent=1 // pred_check
      _
    $region27: #{tpu_custom_call.1} parent=1 // pred_check_branch
      %47 = sbr.rel (0) target = $region29
    $region28: #{tpu_custom_call.1} parent=1 // pred_region
      %48 = dma.done [#allocation6], 3072
    $region29: #{tpu_custom_call.1} parent=1 // pred_fallthru
      _
    %v50 = vld [vmem:[#allocation2] sm:$0xff]
    %v51 = vld [vmem:[#allocation2 + $0x8] sm:$0xff]
    %v52 = vpack.c.bf16 %v51, %v50
    %v53 = vld [vmem:[#allocation5] sm:$0xf]
    %v54 = vld [vmem:[#allocation5 + $0x4] sm:$0xf]
    %v55 = vld [vmem:[#allocation5 + $0x8] sm:$0xf]
    %v56 = vld [vmem:[#allocation5 + $0xc] sm:$0xf]
    %v57 = vld [vmem:[#allocation5 + $0x10] sm:$0xf]
    %v58 = vld [vmem:[#allocation5 + $0x14] sm:$0xf]
    %v59 = vld [vmem:[#allocation5 + $0x18] sm:$0xf]
    %v60 = vld [vmem:[#allocation5 + $0x1c] sm:$0xf]
    %v61 = vld [vmem:[#allocation5 + $0x20] sm:$0xf]
    %v62 = vld [vmem:[#allocation5 + $0x24] sm:$0xf]
    %v63 = vld [vmem:[#allocation5 + $0x28] sm:$0xf]
    %v64 = vld [vmem:[#allocation5 + $0x2c] sm:$0xf]
    %v65 = vld [vmem:[#allocation5 + $0x30] sm:$0xf]
    %v66 = vld [vmem:[#allocation5 + $0x34] sm:$0xf]
    %v67 = vld [vmem:[#allocation5 + $0x38] sm:$0xf]
    %v68 = vld [vmem:[#allocation5 + $0x3c] sm:$0xf]
    %v69 = vld [vmem:[%s2] sm:$0x1]
    %v71 = vlaneseq
    %v72 = vshrl.u32 %v71, 7
    %v73 = vsub.s32 0, %v72
    %v74 = vrot.slane %v69, %v73
    %v92 = vunpack.c.l.b16 %v53
    %v93 = vunpack.c.l.b16 %v54
    %v94 = vunpack.c.l.b16 %v55
    %v95 = vunpack.c.l.b16 %v56
    %v96 = vunpack.c.l.b16 %v57
    %v97 = vunpack.c.l.b16 %v58
    %v98 = vunpack.c.l.b16 %v59
    %v99 = vunpack.c.l.b16 %v60
    %v100 = vunpack.c.l.b16 %v61
    %v101 = vunpack.c.l.b16 %v62
    %v102 = vunpack.c.l.b16 %v63
    %v103 = vunpack.c.l.b16 %v64
    %v104 = vunpack.c.l.b16 %v65
    %v105 = vunpack.c.l.b16 %v66
    %v106 = vunpack.c.l.b16 %v67
    %v107 = vunpack.c.l.b16 %v68
    %v108 = vpack.c.b16 %v93, %v92
    %v109 = vpack.c.b16 %v95, %v94
    %v110 = vpack.c.b16 %v97, %v96
    %v111 = vpack.c.b16 %v99, %v98
    %v112 = vpack.c.b16 %v101, %v100
    %v113 = vpack.c.b16 %v103, %v102
    %v114 = vpack.c.b16 %v105, %v104
    %v115 = vpack.c.b16 %v107, %v106
    %124 = vmatprep.subr.bf16.mxu0 0
    %125 = vmatpush1.bf16.msra.mxu0 %v115
    %126 = vmatprep.subr.bf16.mxu0 0
    %127 = vmatpush1.bf16.msra.mxu0 %v114
    %128 = vmatprep.subr.bf16.mxu0 0
    %129 = vmatpush1.bf16.msra.mxu0 %v113
    %130 = vmatprep.subr.bf16.mxu0 0
    %131 = vmatpush1.bf16.msra.mxu0 %v112
    %132 = vmatprep.subr.bf16.mxu0 0
    %133 = vmatpush1.bf16.msra.mxu0 %v111
    %134 = vmatprep.subr.bf16.mxu0 0
    %135 = vmatpush1.bf16.msra.mxu0 %v110
    %136 = vmatprep.subr.bf16.mxu0 0
    %137 = vmatpush1.bf16.msra.mxu0 %v109
    %138 = vmatprep.subr.bf16.mxu0 0
    %139 = vmatpush1.bf16.msra.mxu0 %v108
    %140 = vmatprep.subr.bf16.mxu0 0
    %141 = vmatpush2.bf16.msra.mxu0 0
    %142 = vmatprep.subr.bf16.mxu0 0
    %143 = vmatpush2.bf16.msra.mxu0 0
    %144 = vmatprep.subr.bf16.mxu0 0
    %145 = vmatpush2.bf16.msra.mxu0 0
    %146 = vmatprep.subr.bf16.mxu0 0
    %147 = vmatpush2.bf16.msra.mxu0 0
    %148 = vmatprep.subr.bf16.mxu0 0
    %149 = vmatpush2.bf16.msra.mxu0 0
    %150 = vmatprep.subr.bf16.mxu0 0
    %151 = vmatpush2.bf16.msra.mxu0 0
    %152 = vmatprep.subr.bf16.mxu0 0
    %153 = vmatpush2.bf16.msra.mxu0 0
    %154 = vmatprep.subr.bf16.mxu0 0
    %155 = vmatpush2.bf16.msra.mxu0 0
    %156 = vmatprep.mubr.bf16.mxu0 0
    %157 = vmatmul.mubr.bf16.gmra.mxu0 %v52
    %v158 = vpop.f32.mrf.mxu0
    %v159 = vadd.f32 %v74, %v158
    %v160 = vpop.f32.mrf.mxu0
    %v161 = vpop.f32.mrf.mxu0
    %v162 = vadd.f32 %v74, %v161
    %v163 = vpop.f32.mrf.mxu0
    %164 = vdwg.mxu0
    %v165 = vadd.f32 %v50, %v159
    %v166 = vadd.f32 %v51, %v162
    %167 = vadd.xlane.f32.xlu0 %v165
    %v168 = vpop.xlane.xlu0 %167
    %169 = vadd.xlane.f32.xlu0 %v166
    %v170 = vpop.xlane.xlu0 %169
    %v171 = vmul.f32 %v168, 0.03125
    %v172 = vmul.f32 %v170, 0.03125
    %v173 = vsub.f32 %v165, %v171
    %v174 = vsub.f32 %v166, %v172
    %v175 = vmul.f32 %v173, %v173
    %v176 = vmul.f32 %v174, %v174
    %177 = vadd.xlane.f32.xlu0 %v175
    %v178 = vpop.xlane.xlu0 %177
    %179 = vadd.xlane.f32.xlu0 %v176
    %v180 = vpop.xlane.xlu0 %179
    %v181 = vmul.f32 %v171, %v171
    %v182 = vmul.f32 %v172, %v172
    %v183 = vmul.f32 %v181, 96.0
    %v184 = vmul.f32 %v182, 96.0
    %v185 = vsub.f32 %v178, %v183
    %v186 = vsub.f32 %v180, %v184
    %v187 = vmul.f32 %v185, 0.03125
    %v188 = vmul.f32 %v186, 0.03125
    %v189 = vadd.f32 %v187, 1e-05
    %v190 = vadd.f32 %v188, 1e-05
    %v191 = vrsqrt.pop %v189
    %v192 = vrsqrt.pop %v190
    %v193 = vmul.f32 %v173, %v191
    %v194 = vmul.f32 %v174, %v192
    %v195 = vld [vmem:[%s3] sm:$0x1]
    %v197 = vlaneseq
    %v198 = vshrl.u32 %v197, 7
    %v199 = vsub.s32 0, %v198
    %v200 = vrot.slane %v195, %v199
    %v202 = vmul.f32 %v193, %v200
    %v203 = vmul.f32 %v194, %v200
    %v204 = vld [vmem:[%s4] sm:$0x1]
    %v206 = vlaneseq
    %v207 = vshrl.u32 %v206, 7
    %v208 = vsub.s32 0, %v207
    %v209 = vrot.slane %v204, %v208
    %v211 = vadd.f32 %v202, %v209
    %v212 = vadd.f32 %v203, %v209
    %v213 = vpack.c.bf16 %v212, %v211
    %s214 = scalar_lea.vmem [#allocation5], 64
    %v215 = vld [vmem:[%s214] sm:$0xf]
    %v216 = vld [vmem:[%s214 + $0x4] sm:$0xf]
    %v217 = vld [vmem:[%s214 + $0x8] sm:$0xf]
    %v218 = vld [vmem:[%s214 + $0xc] sm:$0xf]
    %v219 = vld [vmem:[%s214 + $0x10] sm:$0xf]
    %v220 = vld [vmem:[%s214 + $0x14] sm:$0xf]
    %v221 = vld [vmem:[%s214 + $0x18] sm:$0xf]
    %v222 = vld [vmem:[%s214 + $0x1c] sm:$0xf]
    %v223 = vld [vmem:[%s214 + $0x20] sm:$0xf]
    %v224 = vld [vmem:[%s214 + $0x24] sm:$0xf]
    %v225 = vld [vmem:[%s214 + $0x28] sm:$0xf]
    %v226 = vld [vmem:[%s214 + $0x2c] sm:$0xf]
    %v227 = vld [vmem:[%s214 + $0x30] sm:$0xf]
    %v228 = vld [vmem:[%s214 + $0x34] sm:$0xf]
    %v229 = vld [vmem:[%s214 + $0x38] sm:$0xf]
    %v230 = vld [vmem:[%s214 + $0x3c] sm:$0xf]
    %s231 = scalar_lea.vmem %s2, 1
    %v232 = vld [vmem:[%s231] sm:$0x1]
    %v234 = vlaneseq
    %v235 = vshrl.u32 %v234, 7
    %v236 = vsub.s32 0, %v235
    %v237 = vrot.slane %v232, %v236
    %v255 = vunpack.c.l.b16 %v215
    %v256 = vunpack.c.l.b16 %v216
    %v257 = vunpack.c.l.b16 %v217
    %v258 = vunpack.c.l.b16 %v218
    %v259 = vunpack.c.l.b16 %v219
    %v260 = vunpack.c.l.b16 %v220
    %v261 = vunpack.c.l.b16 %v221
    %v262 = vunpack.c.l.b16 %v222
    %v263 = vunpack.c.l.b16 %v223
    %v264 = vunpack.c.l.b16 %v224
    %v265 = vunpack.c.l.b16 %v225
    %v266 = vunpack.c.l.b16 %v226
    %v267 = vunpack.c.l.b16 %v227
    %v268 = vunpack.c.l.b16 %v228
    %v269 = vunpack.c.l.b16 %v229
    %v270 = vunpack.c.l.b16 %v230
    %v271 = vpack.c.b16 %v256, %v255
    %v272 = vpack.c.b16 %v258, %v257
    %v273 = vpack.c.b16 %v260, %v259
    %v274 = vpack.c.b16 %v262, %v261
    %v275 = vpack.c.b16 %v264, %v263
    %v276 = vpack.c.b16 %v266, %v265
    %v277 = vpack.c.b16 %v268, %v267
    %v278 = vpack.c.b16 %v270, %v269
    %287 = vmatprep.subr.bf16.mxu0 0
    %288 = vmatpush1.bf16.msra.mxu0 %v278
    %289 = vmatprep.subr.bf16.mxu0 0
    %290 = vmatpush1.bf16.msra.mxu0 %v277
    %291 = vmatprep.subr.bf16.mxu0 0
    %292 = vmatpush1.bf16.msra.mxu0 %v276
    %293 = vmatprep.subr.bf16.mxu0 0
    %294 = vmatpush1.bf16.msra.mxu0 %v275
    %295 = vmatprep.subr.bf16.mxu0 0
    %296 = vmatpush1.bf16.msra.mxu0 %v274
    %297 = vmatprep.subr.bf16.mxu0 0
    %298 = vmatpush1.bf16.msra.mxu0 %v273
    %299 = vmatprep.subr.bf16.mxu0 0
    %300 = vmatpush1.bf16.msra.mxu0 %v272
    %301 = vmatprep.subr.bf16.mxu0 0
    %302 = vmatpush1.bf16.msra.mxu0 %v271
    %303 = vmatprep.subr.bf16.mxu0 0
    %304 = vmatpush2.bf16.msra.mxu0 0
    %305 = vmatprep.subr.bf16.mxu0 0
    %306 = vmatpush2.bf16.msra.mxu0 0
    %307 = vmatprep.subr.bf16.mxu0 0
    %308 = vmatpush2.bf16.msra.mxu0 0
    %309 = vmatprep.subr.bf16.mxu0 0
    %310 = vmatpush2.bf16.msra.mxu0 0
    %311 = vmatprep.subr.bf16.mxu0 0
    %312 = vmatpush2.bf16.msra.mxu0 0
    %313 = vmatprep.subr.bf16.mxu0 0
    %314 = vmatpush2.bf16.msra.mxu0 0
    %315 = vmatprep.subr.bf16.mxu0 0
    %316 = vmatpush2.bf16.msra.mxu0 0
    %317 = vmatprep.subr.bf16.mxu0 0
    %318 = vmatpush2.bf16.msra.mxu0 0
    %319 = vmatprep.mubr.bf16.mxu0 0
    %320 = vmatmul.mubr.bf16.gmra.mxu0 %v213
    %v321 = vpop.f32.mrf.mxu0
    %v322 = vadd.f32 %v237, %v321
    %v323 = vpop.f32.mrf.mxu0
    %v324 = vpop.f32.mrf.mxu0
    %v325 = vadd.f32 %v237, %v324
    %v326 = vpop.f32.mrf.mxu0
    %327 = vdwg.mxu0
    %v328 = vadd.f32 %v211, %v322
    %v329 = vadd.f32 %v212, %v325
    %330 = vadd.xlane.f32.xlu0 %v328
    %v331 = vpop.xlane.xlu0 %330
    %332 = vadd.xlane.f32.xlu0 %v329
    %v333 = vpop.xlane.xlu0 %332
    %v334 = vmul.f32 %v331, 0.03125
    %v335 = vmul.f32 %v333, 0.03125
    %v336 = vsub.f32 %v328, %v334
    %v337 = vsub.f32 %v329, %v335
    %v338 = vmul.f32 %v336, %v336
    %v339 = vmul.f32 %v337, %v337
    %340 = vadd.xlane.f32.xlu0 %v338
    %v341 = vpop.xlane.xlu0 %340
    %342 = vadd.xlane.f32.xlu0 %v339
    %v343 = vpop.xlane.xlu0 %342
    %v344 = vmul.f32 %v334, %v334
    %v345 = vmul.f32 %v335, %v335
    %v346 = vmul.f32 %v344, 96.0
    %v347 = vmul.f32 %v345, 96.0
    %v348 = vsub.f32 %v341, %v346
    %v349 = vsub.f32 %v343, %v347
    %v350 = vmul.f32 %v348, 0.03125
    %v351 = vmul.f32 %v349, 0.03125
    %v352 = vadd.f32 %v350, 1e-05
    %v353 = vadd.f32 %v351, 1e-05
    %v354 = vrsqrt.pop %v352
    %v355 = vrsqrt.pop %v353
    %v356 = vmul.f32 %v336, %v354
    %v357 = vmul.f32 %v337, %v355
    %s358 = scalar_lea.vmem %s3, 1
    %v359 = vld [vmem:[%s358] sm:$0x1]
    %v361 = vlaneseq
    %v362 = vshrl.u32 %v361, 7
    %v363 = vsub.s32 0, %v362
    %v364 = vrot.slane %v359, %v363
    %v366 = vmul.f32 %v356, %v364
    %v367 = vmul.f32 %v357, %v364
    %s368 = scalar_lea.vmem %s4, 1
    %v369 = vld [vmem:[%s368] sm:$0x1]
    %v371 = vlaneseq
    %v372 = vshrl.u32 %v371, 7
    %v373 = vsub.s32 0, %v372
    %v374 = vrot.slane %v369, %v373
    %v376 = vadd.f32 %v366, %v374
    %v377 = vadd.f32 %v367, %v374
    %v378 = vpack.c.bf16 %v377, %v376
    %s379 = scalar_lea.vmem [#allocation5], 128
    %v380 = vld [vmem:[%s379] sm:$0xf]
    %v381 = vld [vmem:[%s379 + $0x4] sm:$0xf]
    %v382 = vld [vmem:[%s379 + $0x8] sm:$0xf]
    %v383 = vld [vmem:[%s379 + $0xc] sm:$0xf]
    %v384 = vld [vmem:[%s379 + $0x10] sm:$0xf]
    %v385 = vld [vmem:[%s379 + $0x14] sm:$0xf]
    %v386 = vld [vmem:[%s379 + $0x18] sm:$0xf]
    %v387 = vld [vmem:[%s379 + $0x1c] sm:$0xf]
    %v388 = vld [vmem:[%s379 + $0x20] sm:$0xf]
    %v389 = vld [vmem:[%s379 + $0x24] sm:$0xf]
    %v390 = vld [vmem:[%s379 + $0x28] sm:$0xf]
    %v391 = vld [vmem:[%s379 + $0x2c] sm:$0xf]
    %v392 = vld [vmem:[%s379 + $0x30] sm:$0xf]
    %v393 = vld [vmem:[%s379 + $0x34] sm:$0xf]
    %v394 = vld [vmem:[%s379 + $0x38] sm:$0xf]
    %v395 = vld [vmem:[%s379 + $0x3c] sm:$0xf]
    %s396 = scalar_lea.vmem %s2, 2
    %v397 = vld [vmem:[%s396] sm:$0x1]
    %v399 = vlaneseq
    %v400 = vshrl.u32 %v399, 7
    %v401 = vsub.s32 0, %v400
    %v402 = vrot.slane %v397, %v401
    %v420 = vunpack.c.l.b16 %v380
    %v421 = vunpack.c.l.b16 %v381
    %v422 = vunpack.c.l.b16 %v382
    %v423 = vunpack.c.l.b16 %v383
    %v424 = vunpack.c.l.b16 %v384
    %v425 = vunpack.c.l.b16 %v385
    %v426 = vunpack.c.l.b16 %v386
    %v427 = vunpack.c.l.b16 %v387
    %v428 = vunpack.c.l.b16 %v388
    %v429 = vunpack.c.l.b16 %v389
    %v430 = vunpack.c.l.b16 %v390
    %v431 = vunpack.c.l.b16 %v391
    %v432 = vunpack.c.l.b16 %v392
    %v433 = vunpack.c.l.b16 %v393
    %v434 = vunpack.c.l.b16 %v394
    %v435 = vunpack.c.l.b16 %v395
    %v436 = vpack.c.b16 %v421, %v420
    %v437 = vpack.c.b16 %v423, %v422
    %v438 = vpack.c.b16 %v425, %v424
    %v439 = vpack.c.b16 %v427, %v426
    %v440 = vpack.c.b16 %v429, %v428
    %v441 = vpack.c.b16 %v431, %v430
    %v442 = vpack.c.b16 %v433, %v432
    %v443 = vpack.c.b16 %v435, %v434
    %452 = vmatprep.subr.bf16.mxu0 0
    %453 = vmatpush1.bf16.msra.mxu0 %v443
    %454 = vmatprep.subr.bf16.mxu0 0
    %455 = vmatpush1.bf16.msra.mxu0 %v442
    %456 = vmatprep.subr.bf16.mxu0 0
    %457 = vmatpush1.bf16.msra.mxu0 %v441
    %458 = vmatprep.subr.bf16.mxu0 0
    %459 = vmatpush1.bf16.msra.mxu0 %v440
    %460 = vmatprep.subr.bf16.mxu0 0
    %461 = vmatpush1.bf16.msra.mxu0 %v439
    %462 = vmatprep.subr.bf16.mxu0 0
    %463 = vmatpush1.bf16.msra.mxu0 %v438
    %464 = vmatprep.subr.bf16.mxu0 0
    %465 = vmatpush1.bf16.msra.mxu0 %v437
    %466 = vmatprep.subr.bf16.mxu0 0
    %467 = vmatpush1.bf16.msra.mxu0 %v436
    %468 = vmatprep.subr.bf16.mxu0 0
    %469 = vmatpush2.bf16.msra.mxu0 0
    %470 = vmatprep.subr.bf16.mxu0 0
    %471 = vmatpush2.bf16.msra.mxu0 0
    %472 = vmatprep.subr.bf16.mxu0 0
    %473 = vmatpush2.bf16.msra.mxu0 0
    %474 = vmatprep.subr.bf16.mxu0 0
    %475 = vmatpush2.bf16.msra.mxu0 0
    %476 = vmatprep.subr.bf16.mxu0 0
    %477 = vmatpush2.bf16.msra.mxu0 0
    %478 = vmatprep.subr.bf16.mxu0 0
    %479 = vmatpush2.bf16.msra.mxu0 0
    %480 = vmatprep.subr.bf16.mxu0 0
    %481 = vmatpush2.bf16.msra.mxu0 0
    %482 = vmatprep.subr.bf16.mxu0 0
    %483 = vmatpush2.bf16.msra.mxu0 0
    %484 = vmatprep.mubr.bf16.mxu0 0
    %485 = vmatmul.mubr.bf16.gmra.mxu0 %v378
    %v486 = vpop.f32.mrf.mxu0
    %v487 = vadd.f32 %v402, %v486
    %v488 = vpop.f32.mrf.mxu0
    %v489 = vpop.f32.mrf.mxu0
    %v490 = vadd.f32 %v402, %v489
    %v491 = vpop.f32.mrf.mxu0
    %492 = vdwg.mxu0
    %v493 = vadd.f32 %v376, %v487
    %v494 = vadd.f32 %v377, %v490
    %495 = vadd.xlane.f32.xlu0 %v493
    %v496 = vpop.xlane.xlu0 %495
    %497 = vadd.xlane.f32.xlu0 %v494
    %v498 = vpop.xlane.xlu0 %497
    %v499 = vmul.f32 %v496, 0.03125
    %v500 = vmul.f32 %v498, 0.03125
    %v501 = vsub.f32 %v493, %v499
    %v502 = vsub.f32 %v494, %v500
    %v503 = vmul.f32 %v501, %v501
    %v504 = vmul.f32 %v502, %v502
    %505 = vadd.xlane.f32.xlu0 %v503
    %v506 = vpop.xlane.xlu0 %505
    %507 = vadd.xlane.f32.xlu0 %v504
    %v508 = vpop.xlane.xlu0 %507
    %v509 = vmul.f32 %v499, %v499
    %v510 = vmul.f32 %v500, %v500
    %v511 = vmul.f32 %v509, 96.0
    %v512 = vmul.f32 %v510, 96.0
    %v513 = vsub.f32 %v506, %v511
    %v514 = vsub.f32 %v508, %v512
    %v515 = vmul.f32 %v513, 0.03125
    %v516 = vmul.f32 %v514, 0.03125
    %v517 = vadd.f32 %v515, 1e-05
    %v518 = vadd.f32 %v516, 1e-05
    %v519 = vrsqrt.pop %v517
    %v520 = vrsqrt.pop %v518
    %v521 = vmul.f32 %v501, %v519
    %v522 = vmul.f32 %v502, %v520
    %s523 = scalar_lea.vmem %s3, 2
    %v524 = vld [vmem:[%s523] sm:$0x1]
    %v526 = vlaneseq
    %v527 = vshrl.u32 %v526, 7
    %v528 = vsub.s32 0, %v527
    %v529 = vrot.slane %v524, %v528
    %v531 = vmul.f32 %v521, %v529
    %v532 = vmul.f32 %v522, %v529
    %s533 = scalar_lea.vmem %s4, 2
    %v534 = vld [vmem:[%s533] sm:$0x1]
    %v536 = vlaneseq
    %v537 = vshrl.u32 %v536, 7
    %v538 = vsub.s32 0, %v537
    %v539 = vrot.slane %v534, %v538
    %v541 = vadd.f32 %v531, %v539
    %v542 = vadd.f32 %v532, %v539
    %543 = vst [vmem:[#allocation7] sm:$0xff] %v541
    %544 = vst [vmem:[#allocation7 + $0x8] sm:$0xff] %v542
    // Predicated region
    $region30: #{tpu_custom_call.1} parent=1 // pred_check
      _
    $region31: #{tpu_custom_call.1} parent=1 // pred_check_branch
      %546 = sbr.rel (0) target = $region33
    $region32: #{tpu_custom_call.1} parent=1 // pred_region
      %s548 = ssub.s32 256, 256
      %549 = vsyncadd [#allocation4], %s548
      %s550 = sshll.u32 [#allocation7], 4
      %s551 = int_to_ptr.vmem [resolvable:$true] %s550
      %556 = dma.vmem_to_hbm [thread:$0]  %s551, 256, %s5, [#allocation4], 128, 128, 8
    $region33: #{tpu_custom_call.1} parent=1 // pred_fallthru
      _
    // Predicated region
    $region34: #{tpu_custom_call.1} parent=1 // pred_check
      _
    $region35: #{tpu_custom_call.1} parent=1 // pred_check_branch
      %558 = sbr.rel (0) target = $region37
    $region36: #{tpu_custom_call.1} parent=1 // pred_region
      %559 = dma.done [#allocation4], 256
    $region37: #{tpu_custom_call.1} parent=1 // pred_fallthru
      _
    %560 = vsyncpa [#allocation3], 1
    %561 = vsyncpa [#allocation6], 1
    %562 = vsyncpa [#allocation4], 1

</llo_original>
